<compile_context>
chip_gen: v6e
topology: v6e:2x2x1
jax: 0.10.0
libtpu: 0.0.40
codegen_flags: <defaults>
</compile_context>

<pallas_src>
import functools
import math

import jax
import jax.numpy as jnp
from jax.experimental import pallas as pl
from jax.experimental.pallas import tpu as pltpu


def _round_up(x, m):
    return (x + m - 1) // m * m


def _layout(factor_num, use_gmf, use_mlp):
    """Within-group lane offsets of the packed activation slab."""
    F = factor_num
    off = 0
    gu = gi = mu = mi = None
    if use_gmf:
        gu, gi = off, off + F
        off += 2 * F
    if use_mlp:
        mu, mi = off, off + F
        off += 2 * F
    G = max(128, _round_up(off, 128))          # lane-group width (item_i / item_j)
    return gu, gi, mu, mi, G


def _make_ncf_kernel(n_hidden, use_gmf, use_mlp):
    """Fused NCF forward for one (TB, 2G) batch tile.

    Ref order (must match args construction in ncf_forward):
      x,
      [gmf_align]                      if use_gmf
      [w0_blk, b0_blk, (w_blk, b_blk) * n_hidden]   if use_mlp
      [wp_gmf]                         if use_gmf
      [wp_mlp]                         if use_mlp
      bp (SMEM scalar), out_ref
    """

    def kernel(*refs):
        it = iter(refs)
        x_ref = next(it)
        if use_gmf:
            align_ref = next(it)
        if use_mlp:
            w0_ref, b0_ref = next(it), next(it)
            hidden = [(next(it), next(it)) for _ in range(n_hidden)]
        if use_gmf:
            wpg_ref = next(it)
        if use_mlp:
            wpm_ref = next(it)
        bp_ref = next(it)
        out_ref = next(it)

        tb = out_ref.shape[1]
        g = x_ref.shape[1] // 2                  # lane-group width (multiple of 128)
        x = x_ref[...]                           # (TB, 2G) bf16 packed slab
        acc = None                               # (TB, 2G) predict-weighted features

        if use_mlp:
            # Layer 0 (Linear(2F->F) + ReLU) for BOTH items in one block matmul;
            # bias is folded in once.  Padded lanes stay exactly zero.
            h = jnp.maximum(
                jnp.dot(x, w0_ref[...], preferred_element_type=jnp.float32)
                + b0_ref[...], 0.0)
            # Hidden Linear(F->F) + ReLU layers: block-diagonal (2G, 2G) bf16
            # weights -> one matmul per layer serves both items (f32 accum).
            for w_ref, b_ref in hidden:
                h = jnp.maximum(
                    jnp.dot(h.astype(jnp.bfloat16), w_ref[...],
                            preferred_element_type=jnp.float32) + b_ref[...], 0.0)
            acc = h * wpm_ref[...]               # wp_mlp lane mask

        if use_gmf:
            # One-hot "align" matmul copies u_GMF onto the item-GMF lanes of each
            # group (exact for bf16 inputs); elementwise product with the slab
            # gives u*item on those lanes; wp_gmf doubles as the lane mask.
            ua = jnp.dot(x, align_ref[...], preferred_element_type=jnp.float32)
            prod = ua * x.astype(jnp.float32)
            contrib = prod * wpg_ref[...]
            acc = contrib if acc is None else acc + contrib

        # Predict layer: masked multiplies above + one lane reduction per half
        # (keeps the MXU free); bias is an SMEM scalar.  Single (2, TB) store.
        bp = bp_ref[0, 0]
        pred_i = jnp.sum(acc[:, :g], axis=-1) + bp       # (TB,)
        pred_j = jnp.sum(acc[:, g:], axis=-1) + bp       # (TB,)
        out_ref[...] = jnp.concatenate(
            [pred_i.reshape(1, tb), pred_j.reshape(1, tb)], axis=0)

    return kernel


@functools.partial(jax.jit, static_argnames=("model",))
def ncf_forward(user, item_i, item_j, params, *, model="NeuMF-end"):
    """Matches NCF.forward(user, item_i, item_j) -> (pred_i, pred_j) (eval mode)."""
    use_gmf = model != "MLP"
    use_mlp = model != "GMF"

    table = params["embed_user_MLP"] if use_mlp else params["embed_user_GMF"]
    F = table.shape[1]
    _, _, _, _, G = _layout(F, use_gmf, use_mlp)
    L = 2 * G

    B = user.shape[0]
    # Batch tile: lane-aligned, capped at 2048 rows (HBM efficiency plateaus at
    # 1024-2048-row tiles), and chosen so there are always >= 2 grid tiles so the
    # "parallel" axis can feed both v7x TensorCores.
    TB = min(2048, _round_up(max(1, -(-B // 2)), 128))
    B_pad = max(_round_up(B, TB), 2 * TB)
    num_tiles = B_pad // TB

    def pad_idx(ix):
        return jnp.pad(ix, (0, B_pad - B))       # padded rows gather row 0

    u = pad_idx(user)
    ii = pad_idx(item_i)
    ij = pad_idx(item_j)

    # Pack all gathered embeddings into ONE lane-dense bf16 slab (512 B/row for
    # F=32 NeuMF instead of 1536 B/row with per-embedding 128-lane padding).
    # TODO(synk): for small embedding tables, do this gather in-kernel from
    # VMEM-resident tables via scalar-prefetched indices to save one HBM trip.
    ug = params["embed_user_GMF"][u] if use_gmf else None
    um = params["embed_user_MLP"][u] if use_mlp else None

    def group(item_idx):
        cols = []
        if use_gmf:
            cols += [ug, params["embed_item_GMF"][item_idx]]
        if use_mlp:
            cols += [um, params["embed_item_MLP"][item_idx]]
        grp = jnp.concatenate(cols, axis=-1)
        return jnp.pad(grp, ((0, 0), (0, G - grp.shape[-1])))

    x = jnp.concatenate([group(ii), group(ij)], axis=-1)     # (B_pad, 2G) bf16

    row_spec = pl.BlockSpec((TB, L), lambda t: (t, 0))
    # Constant index_maps -> weights/biases stay VMEM-resident across tiles.
    mat_spec = pl.BlockSpec((L, L), lambda t: (0, 0))
    vec_spec = pl.BlockSpec((1, L), lambda t: (0, 0))

    args, in_specs = [x], [row_spec]
    if use_gmf:
        args.append(params["gmf_align"])
        in_specs.append(mat_spec)
    if use_mlp:
        args += [params["w0_blk"], params["b0_blk"]]
        in_specs += [mat_spec, vec_spec]
        for w, b in params["hidden"]:
            args += [w, b]
            in_specs += [mat_spec, vec_spec]
    if use_gmf:
        args.append(params["wp_gmf"])
        in_specs.append(vec_spec)
    if use_mlp:
        args.append(params["wp_mlp"])
        in_specs.append(vec_spec)
    args.append(params["bp"])
    in_specs.append(pl.BlockSpec(memory_space=pltpu.MemorySpace.SMEM))

    n_hidden = len(params["hidden"]) if use_mlp else 0

    out = pl.pallas_call(
        _make_ncf_kernel(n_hidden, use_gmf, use_mlp),
        out_shape=jax.ShapeDtypeStruct((2, B_pad), jnp.float32),
        grid=(num_tiles,),
        in_specs=in_specs,
        out_specs=pl.BlockSpec((2, TB), lambda t: (0, t)),
        compiler_params=pltpu.CompilerParams(
            dimension_semantics=("parallel",),
            vmem_limit_bytes=40 * 1024 * 1024),   # covers TB=2048 on v5e..v7x
    )(*args)

    return out[0, :B], out[1, :B]


def init_params(key, user_num, item_num, factor_num, num_layers,
                model="NeuMF-end"):
    """Synthetic init mirroring NCF._init_weight_ (non-'NeuMF-pre' branch).

    Weights that feed the MXU are pre-packed into block-structured (2G, 2G)
    bf16 matrices matching the packed activation layout; predict weights are
    (1, 2G) f32 lane masks.  Zero padding keeps results identical to the
    unpadded computation.
    """
    use_gmf = model != "MLP"
    use_mlp = model != "GMF"
    F = factor_num
    gu, gi, mu, mi, G = _layout(F, use_gmf, use_mlp)
    L = 2 * G

    keys = iter(jax.random.split(key, 8 + 2 * num_layers))

    def embedding(k, n):
        return (0.01 * jax.random.normal(k, (n, F), jnp.float32)).astype(jnp.bfloat16)

    def xavier(k, fan_in, fan_out):
        bound = math.sqrt(6.0 / (fan_in + fan_out))
        return jax.random.uniform(k, (fan_in, fan_out), jnp.float32, -bound, bound)

    params = {}

    if use_gmf:
        params["embed_user_GMF"] = embedding(next(keys), user_num)
        params["embed_item_GMF"] = embedding(next(keys), item_num)
        # One-hot matrix copying u_GMF lanes onto the item-GMF lanes, per group.
        eye = jnp.eye(F, dtype=jnp.float32)
        align = jnp.zeros((L, L), jnp.float32)
        for base in (0, G):
            align = align.at[base + gu:base + gu + F,
                             base + gi:base + gi + F].set(eye)
        params["gmf_align"] = align.astype(jnp.bfloat16)

    if use_mlp:
        params["embed_user_MLP"] = embedding(next(keys), user_num)
        params["embed_item_MLP"] = embedding(next(keys), item_num)

        # Layer 0: Linear(2F -> F), stored [in, out]; placed for both groups.
        w0 = xavier(next(keys), 2 * F, F)
        w0_blk = jnp.zeros((L, L), jnp.float32)
        for base in (0, G):
            w0_blk = w0_blk.at[base + mu:base + mu + F, base:base + F].set(w0[:F])
            w0_blk = w0_blk.at[base + mi:base + mi + F, base:base + F].set(w0[F:])
        params["w0_blk"] = w0_blk.astype(jnp.bfloat16)
        params["b0_blk"] = jnp.zeros((1, L), jnp.float32)   # torch zeroes biases

        hidden = []
        for _ in range(num_layers - 1):
            w = xavier(next(keys), F, F)
            w_blk = jnp.zeros((L, L), jnp.float32)
            for base in (0, G):
                w_blk = w_blk.at[base:base + F, base:base + F].set(w)
            hidden.append((w_blk.astype(jnp.bfloat16),
                           jnp.zeros((1, L), jnp.float32)))
        params["hidden"] = hidden

    # Predict layer: kaiming_uniform(a=1, nonlinearity='sigmoid') -> gain = 1.
    predict_size = F if model in ("MLP", "GMF") else 2 * F
    bound = math.sqrt(3.0 / predict_size)
    wp = jax.random.uniform(next(keys), (predict_size,), jnp.float32, -bound, bound)

    if use_gmf and use_mlp:
        wp_gmf, wp_mlp = wp[:F], wp[F:]
    elif use_gmf:
        wp_gmf, wp_mlp = wp, None
    else:
        wp_gmf, wp_mlp = None, wp

    if use_gmf:
        wpg = jnp.zeros((1, L), jnp.float32)
        for base in (0, G):
            wpg = wpg.at[0, base + gi:base + gi + F].set(wp_gmf)
        params["wp_gmf"] = wpg
    if use_mlp:
        wpm = jnp.zeros((1, L), jnp.float32)
        for base in (0, G):
            wpm = wpm.at[0, base:base + F].set(wp_mlp)
        params["wp_mlp"] = wpm
    params["bp"] = jnp.zeros((1, 1), jnp.float32)

    return params


def ncf_reference(user, item_i, item_j, params, model):
    """Plain-JAX reference (mirrors the kernel's bf16 rounding) for validation."""
    use_gmf = model != "MLP"
    use_mlp = model != "GMF"
    table = params["embed_user_MLP"] if use_mlp else params["embed_user_GMF"]
    F = table.shape[1]
    gu, gi, mu, mi, G = _layout(F, use_gmf, use_mlp)

    def one(item):
        pred = jnp.zeros((user.shape[0],), jnp.float32)
        if use_gmf:
            ug = params["embed_user_GMF"][user].astype(jnp.float32)
            ig = params["embed_item_GMF"][item].astype(jnp.float32)
            pred = pred + (ug * ig) @ params["wp_gmf"][0, gi:gi + F]
        if use_mlp:
            um = params["embed_user_MLP"][user].astype(jnp.float32)
            im = params["embed_item_MLP"][item].astype(jnp.float32)
            h = jnp.concatenate([um, im], axis=-1)
            w0 = jnp.concatenate(
                [params["w0_blk"][mu:mu + F, :F],
                 params["w0_blk"][mi:mi + F, :F]], axis=0).astype(jnp.float32)
            h = jax.nn.relu(h @ w0 + params["b0_blk"][0, :F])
            for w_blk, b_blk in params["hidden"]:
                w = w_blk[:F, :F].astype(jnp.float32)
                h = h.astype(jnp.bfloat16).astype(jnp.float32)  # mirror kernel
                h = jax.nn.relu(h @ w + b_blk[0, :F])
            pred = pred + h @ params["wp_mlp"][0, :F]
        return pred + params["bp"][0, 0]

    return one(item_i), one(item_j)


if __name__ == "__main__":
    user_num, item_num = 100, 200
    factor_num = 32
    num_layers = 3
    batch = 8
    model = "NeuMF-end"          # full NeuMF: GMF + MLP paths

    key = jax.random.PRNGKey(0)
    k_param, k_u, k_i, k_j = jax.random.split(key, 4)

    params = init_params(k_param, user_num, item_num, factor_num,
                         num_layers, model)

    user = jax.random.randint(k_u, (batch,), 0, user_num)
    item_i = jax.random.randint(k_i, (batch,), 0, item_num)
    item_j = jax.random.randint(k_j, (batch,), 0, item_num)

    pred_i, pred_j = ncf_forward(user, item_i, item_j, params, model=model)
    jax.block_until_ready((pred_i, pred_j))

    ref_i, ref_j = ncf_reference(user, item_i, item_j, params, model)

    assert pred_i.shape == (batch,) and pred_j.shape == (batch,)
    assert bool(jnp.all(jnp.isfinite(pred_i)))
    assert bool(jnp.all(jnp.isfinite(pred_j)))
    assert bool(jnp.allclose(pred_i, ref_i, rtol=1e-2, atol=1e-4))
    assert bool(jnp.allclose(pred_j, ref_j, rtol=1e-2, atol=1e-4))
    print("KERNEL_OK")
</pallas_src>

<mosaic_0001>
module attributes {stable_mosaic.version = 11 : i64} {
  func.func @kernel(%arg0: i32, %arg1: memref<128x256xbf16, #tpu.memory_space<vmem>>, %arg2: memref<256x256xbf16, #tpu.memory_space<vmem>>, %arg3: memref<256x256xbf16, #tpu.memory_space<vmem>>, %arg4: memref<1x256xf32, #tpu.memory_space<vmem>>, %arg5: memref<256x256xbf16, #tpu.memory_space<vmem>>, %arg6: memref<1x256xf32, #tpu.memory_space<vmem>>, %arg7: memref<256x256xbf16, #tpu.memory_space<vmem>>, %arg8: memref<1x256xf32, #tpu.memory_space<vmem>>, %arg9: memref<1x256xf32, #tpu.memory_space<vmem>>, %arg10: memref<1x256xf32, #tpu.memory_space<vmem>>, %arg11: memref<1x1xf32, #tpu.memory_space<smem>>, %arg12: memref<2x128xf32, #tpu.memory_space<vmem>>) attributes {dimension_semantics = [#tpu.dimension_semantics<parallel>], iteration_bounds = array<i64: 2>, scalar_prefetch = 0 : i64, scratch_operands = 0 : i64, tpu.core_type = #tpu.core_type<tc>, window_params = [{transform_indices = @transform_0, window_bounds = array<i64: 128, 256>}, {pipeline_mode = #tpu.pipeline_mode<synchronous>, transform_indices = @transform_1, window_bounds = array<i64: 256, 256>}, {pipeline_mode = #tpu.pipeline_mode<synchronous>, transform_indices = @transform_2, window_bounds = array<i64: 256, 256>}, {pipeline_mode = #tpu.pipeline_mode<synchronous>, transform_indices = @transform_3, window_bounds = array<i64: 1, 256>}, {pipeline_mode = #tpu.pipeline_mode<synchronous>, transform_indices = @transform_4, window_bounds = array<i64: 256, 256>}, {pipeline_mode = #tpu.pipeline_mode<synchronous>, transform_indices = @transform_5, window_bounds = array<i64: 1, 256>}, {pipeline_mode = #tpu.pipeline_mode<synchronous>, transform_indices = @transform_6, window_bounds = array<i64: 256, 256>}, {pipeline_mode = #tpu.pipeline_mode<synchronous>, transform_indices = @transform_7, window_bounds = array<i64: 1, 256>}, {pipeline_mode = #tpu.pipeline_mode<synchronous>, transform_indices = @transform_8, window_bounds = array<i64: 1, 256>}, {pipeline_mode = #tpu.pipeline_mode<synchronous>, transform_indices = @transform_9, window_bounds = array<i64: 1, 256>}, {transform_indices = @transform_10, window_bounds = array<i64: 1, 1>}, {transform_indices = @transform_11, window_bounds = array<i64: 2, 128>}]} {
    %c0 = arith.constant 0 : index
    %c0_0 = arith.constant 0 : index
    %0 = vector.load %arg1[%c0, %c0_0] : memref<128x256xbf16, #tpu.memory_space<vmem>>, vector<128x256xbf16>
    %c0_1 = arith.constant 0 : index
    %c0_2 = arith.constant 0 : index
    %1 = vector.load %arg3[%c0_1, %c0_2] : memref<256x256xbf16, #tpu.memory_space<vmem>>, vector<256x256xbf16>
    %cst = arith.constant dense<0.000000e+00> : vector<128x256xf32>
    %2 = tpu.matmul %0, %1, %cst {dimension_numbers = #tpu.dot_dimension_numbers<[1], [0], [0], [1], [0, 0, 1, 1], [], []>} : vector<128x256xbf16>, vector<256x256xbf16>, vector<128x256xf32> -> vector<128x256xf32>
    %c0_3 = arith.constant 0 : index
    %c0_4 = arith.constant 0 : index
    %3 = vector.load %arg4[%c0_3, %c0_4] : memref<1x256xf32, #tpu.memory_space<vmem>>, vector<1x256xf32>
    %4 = vector.broadcast %3 : vector<1x256xf32> to vector<128x256xf32>
    %5 = arith.addf %2, %4 : vector<128x256xf32>
    %cst_5 = arith.constant 0.000000e+00 : f32
    %6 = vector.broadcast %cst_5 : f32 to vector<128x256xf32>
    %7 = arith.maximumf %5, %6 : vector<128x256xf32>
    %8 = arith.truncf %7 : vector<128x256xf32> to vector<128x256xbf16>
    %c0_6 = arith.constant 0 : index
    %c0_7 = arith.constant 0 : index
    %9 = vector.load %arg5[%c0_6, %c0_7] : memref<256x256xbf16, #tpu.memory_space<vmem>>, vector<256x256xbf16>
    %cst_8 = arith.constant dense<0.000000e+00> : vector<128x256xf32>
    %10 = tpu.matmul %8, %9, %cst_8 {dimension_numbers = #tpu.dot_dimension_numbers<[1], [0], [0], [1], [0, 0, 1, 1], [], []>} : vector<128x256xbf16>, vector<256x256xbf16>, vector<128x256xf32> -> vector<128x256xf32>
    %c0_9 = arith.constant 0 : index
    %c0_10 = arith.constant 0 : index
    %11 = vector.load %arg6[%c0_9, %c0_10] : memref<1x256xf32, #tpu.memory_space<vmem>>, vector<1x256xf32>
    %12 = vector.broadcast %11 : vector<1x256xf32> to vector<128x256xf32>
    %13 = arith.addf %10, %12 : vector<128x256xf32>
    %cst_11 = arith.constant 0.000000e+00 : f32
    %14 = vector.broadcast %cst_11 : f32 to vector<128x256xf32>
    %15 = arith.maximumf %13, %14 : vector<128x256xf32>
    %16 = arith.truncf %15 : vector<128x256xf32> to vector<128x256xbf16>
    %c0_12 = arith.constant 0 : index
    %c0_13 = arith.constant 0 : index
    %17 = vector.load %arg7[%c0_12, %c0_13] : memref<256x256xbf16, #tpu.memory_space<vmem>>, vector<256x256xbf16>
    %cst_14 = arith.constant dense<0.000000e+00> : vector<128x256xf32>
    %18 = tpu.matmul %16, %17, %cst_14 {dimension_numbers = #tpu.dot_dimension_numbers<[1], [0], [0], [1], [0, 0, 1, 1], [], []>} : vector<128x256xbf16>, vector<256x256xbf16>, vector<128x256xf32> -> vector<128x256xf32>
    %c0_15 = arith.constant 0 : index
    %c0_16 = arith.constant 0 : index
    %19 = vector.load %arg8[%c0_15, %c0_16] : memref<1x256xf32, #tpu.memory_space<vmem>>, vector<1x256xf32>
    %20 = vector.broadcast %19 : vector<1x256xf32> to vector<128x256xf32>
    %21 = arith.addf %18, %20 : vector<128x256xf32>
    %cst_17 = arith.constant 0.000000e+00 : f32
    %22 = vector.broadcast %cst_17 : f32 to vector<128x256xf32>
    %23 = arith.maximumf %21, %22 : vector<128x256xf32>
    %c0_18 = arith.constant 0 : index
    %c0_19 = arith.constant 0 : index
    %24 = vector.load %arg10[%c0_18, %c0_19] : memref<1x256xf32, #tpu.memory_space<vmem>>, vector<1x256xf32>
    %25 = vector.broadcast %24 : vector<1x256xf32> to vector<128x256xf32>
    %26 = arith.mulf %23, %25 : vector<128x256xf32>
    %c0_20 = arith.constant 0 : index
    %c0_21 = arith.constant 0 : index
    %27 = vector.load %arg2[%c0_20, %c0_21] : memref<256x256xbf16, #tpu.memory_space<vmem>>, vector<256x256xbf16>
    %cst_22 = arith.constant dense<0.000000e+00> : vector<128x256xf32>
    %28 = tpu.matmul %0, %27, %cst_22 {dimension_numbers = #tpu.dot_dimension_numbers<[1], [0], [0], [1], [0, 0, 1, 1], [], []>} : vector<128x256xbf16>, vector<256x256xbf16>, vector<128x256xf32> -> vector<128x256xf32>
    %29 = arith.extf %0 : vector<128x256xbf16> to vector<128x256xf32>
    %30 = arith.mulf %28, %29 : vector<128x256xf32>
    %c0_23 = arith.constant 0 : index
    %c0_24 = arith.constant 0 : index
    %31 = vector.load %arg9[%c0_23, %c0_24] : memref<1x256xf32, #tpu.memory_space<vmem>>, vector<1x256xf32>
    %32 = vector.broadcast %31 : vector<1x256xf32> to vector<128x256xf32>
    %33 = arith.mulf %30, %32 : vector<128x256xf32>
    %34 = arith.addf %26, %33 : vector<128x256xf32>
    %c0_25 = arith.constant 0 : index
    %c0_26 = arith.constant 0 : index
    %35 = memref.load %arg11[%c0_25, %c0_26] : memref<1x1xf32, #tpu.memory_space<smem>>
    %36 = vector.extract_strided_slice %34 {offsets = [0, 0], sizes = [128, 128], strides = [1, 1]} : vector<128x256xf32> to vector<128x128xf32>
    %cst_27 = arith.constant dense<0.000000e+00> : vector<128xf32>
    %37 = vector.multi_reduction <add>, %36, %cst_27 [1] : vector<128x128xf32> to vector<128xf32>
    %38 = vector.broadcast %35 : f32 to vector<128xf32>
    %39 = arith.addf %37, %38 : vector<128xf32>
    %40 = vector.extract_strided_slice %34 {offsets = [0, 128], sizes = [128, 128], strides = [1, 1]} : vector<128x256xf32> to vector<128x128xf32>
    %cst_28 = arith.constant dense<0.000000e+00> : vector<128xf32>
    %41 = vector.multi_reduction <add>, %40, %cst_28 [1] : vector<128x128xf32> to vector<128xf32>
    %42 = vector.broadcast %35 : f32 to vector<128xf32>
    %43 = arith.addf %41, %42 : vector<128xf32>
    %44 = vector.shape_cast %39 : vector<128xf32> to vector<1x128xf32>
    %45 = vector.shape_cast %43 : vector<128xf32> to vector<1x128xf32>
    %46 = tpu.concatenate %44, %45 in 0 : vector<1x128xf32>, vector<1x128xf32> -> vector<2x128xf32>
    %c0_29 = arith.constant 0 : index
    %c0_30 = arith.constant 0 : index
    %47 = vector.load %arg12[%c0_29, %c0_30] : memref<2x128xf32, #tpu.memory_space<vmem>>, vector<2x128xf32>
    tpu.vector_store %arg12[%c0_29, %c0_30], %46 {strides = array<i32>} : memref<2x128xf32, #tpu.memory_space<vmem>>, vector<2x128xf32>,
    return
  }
  func.func @transform_0(%arg0: i32) -> (i32, i32) {
    %c0_i32 = arith.constant 0 : i32
    %c0_i32_0 = arith.constant 0 : i32
    return %arg0, %c0_i32 : i32, i32
  }
  func.func @transform_1(%arg0: i32) -> (i32, i32) {
    %c0_i32 = arith.constant 0 : i32
    %c0_i32_0 = arith.constant 0 : i32
    %c0_i32_1 = arith.constant 0 : i32
    return %c0_i32, %c0_i32_0 : i32, i32
  }
  func.func @transform_2(%arg0: i32) -> (i32, i32) {
    %c0_i32 = arith.constant 0 : i32
    %c0_i32_0 = arith.constant 0 : i32
    %c0_i32_1 = arith.constant 0 : i32
    return %c0_i32, %c0_i32_0 : i32, i32
  }
  func.func @transform_3(%arg0: i32) -> (i32, i32) {
    %c0_i32 = arith.constant 0 : i32
    %c0_i32_0 = arith.constant 0 : i32
    %c0_i32_1 = arith.constant 0 : i32
    return %c0_i32, %c0_i32_0 : i32, i32
  }
  func.func @transform_4(%arg0: i32) -> (i32, i32) {
    %c0_i32 = arith.constant 0 : i32
    %c0_i32_0 = arith.constant 0 : i32
    %c0_i32_1 = arith.constant 0 : i32
    return %c0_i32, %c0_i32_0 : i32, i32
  }
  func.func @transform_5(%arg0: i32) -> (i32, i32) {
    %c0_i32 = arith.constant 0 : i32
    %c0_i32_0 = arith.constant 0 : i32
    %c0_i32_1 = arith.constant 0 : i32
    return %c0_i32, %c0_i32_0 : i32, i32
  }
  func.func @transform_6(%arg0: i32) -> (i32, i32) {
    %c0_i32 = arith.constant 0 : i32
    %c0_i32_0 = arith.constant 0 : i32
    %c0_i32_1 = arith.constant 0 : i32
    return %c0_i32, %c0_i32_0 : i32, i32
  }
  func.func @transform_7(%arg0: i32) -> (i32, i32) {
    %c0_i32 = arith.constant 0 : i32
    %c0_i32_0 = arith.constant 0 : i32
    %c0_i32_1 = arith.constant 0 : i32
    return %c0_i32, %c0_i32_0 : i32, i32
  }
  func.func @transform_8(%arg0: i32) -> (i32, i32) {
    %c0_i32 = arith.constant 0 : i32
    %c0_i32_0 = arith.constant 0 : i32
    %c0_i32_1 = arith.constant 0 : i32
    return %c0_i32, %c0_i32_0 : i32, i32
  }
  func.func @transform_9(%arg0: i32) -> (i32, i32) {
    %c0_i32 = arith.constant 0 : i32
    %c0_i32_0 = arith.constant 0 : i32
    %c0_i32_1 = arith.constant 0 : i32
    return %c0_i32, %c0_i32_0 : i32, i32
  }
  func.func @transform_10(%arg0: i32) -> (i32, i32) {
    %c0_i32 = arith.constant 0 : i32
    %c0_i32_0 = arith.constant 0 : i32
    %c0_i32_1 = arith.constant 0 : i32
    return %c0_i32, %c0_i32_0 : i32, i32
  }
  func.func @transform_11(%arg0: i32) -> (i32, i32) {
    %c0_i32 = arith.constant 0 : i32
    %c0_i32_0 = arith.constant 0 : i32
    return %c0_i32, %arg0 : i32, i32
  }
}

</mosaic_0001>

<llo_original>
// kernel: ncf_forward.1
$region0: #{ncf_forward.1}
  #allocation0 [shape = 'u32[]', space=smem, size = 0x4, offset = 0x4, fixed_abs, tag = 'smem constant byte address 0x4 - core index']
  #allocation1 [shape = 'u32[144,128]{1,0:T(1,128)}', space=vmem, size = 0x12000, scoped, tag = 'internal scratch']
  #allocation2 [shape = 'f32[1,1]{1,0:T(1,128)S(6)}', space=smem, size = 0x200, scoped, tag = 'scoped memory for ncf_forward.1']
  %s0 = inlined_call_operand.vmem [shape: bf16[256,256], index: 0, kind: input, shape index: {}]
  %s1 = inlined_call_operand.vmem [shape: bf16[256,256], index: 1, kind: input, shape index: {}]
  %s2 = inlined_call_operand.vmem [shape: bf16[256,256], index: 2, kind: input, shape index: {}]
  %s3 = inlined_call_operand.vmem [shape: f32[1,256], index: 3, kind: input, shape index: {}]
  %s4 = inlined_call_operand.vmem [shape: bf16[256,256], index: 4, kind: input, shape index: {}]
  %s5 = inlined_call_operand.vmem [shape: f32[1,256], index: 5, kind: input, shape index: {}]
  %s6 = inlined_call_operand.vmem [shape: bf16[256,256], index: 6, kind: input, shape index: {}]
  %s7 = inlined_call_operand.vmem [shape: f32[1,256], index: 7, kind: input, shape index: {}]
  %s8 = inlined_call_operand.vmem [shape: f32[1,256], index: 8, kind: input, shape index: {}]
  %s9 = inlined_call_operand.vmem [shape: f32[1,256], index: 9, kind: input, shape index: {}]
  %s10 = inlined_call_operand.<no memory space> [shape: f32[1,1], index: 10, kind: input, shape index: {}]
  %s11 = inlined_call_operand.vmem [shape: f32[2,256], index: 11, kind: output, shape index: {}]
  %s12 = sld [smem:[#allocation0]]
  $region77: #{ncf_forward.1} parent=0
    _
  %s14 = ssub.s32 1, %s12
  %s15 = scalar_select 0, %s14, %s12
  %16 = sst [smem:[#allocation2]] %s10
  loop: start=0, step=1, limit=4
  $region2: #{ncf_forward.1} parent=0 // loop_pre_header
    _
  $region3: #{ncf_forward.1} parent=0 // loop_header
    %s18 = sphi 0, %s22
    %p19 = scmp.ge.s32.totalorder %s18, 4
    %s28 = sphi 0, %s30
    %s31 = sphi 0, %s28
    %s32 = sphi 0, %s31
    %s48 = sphi 0, %s32
    %s52 = sphi 0, %s52
    %s54 = sphi 0, %s52
    %s55 = sphi 0, %s54
    %s69 = sphi 0, %s55
    %s73 = sphi 0, %s73
    %s75 = sphi 0, %s73
    %s76 = sphi 0, %s75
    %s90 = sphi 0, %s76
    %s94 = sphi 0, %s94
    %s96 = sphi 0, %s94
    %s97 = sphi 0, %s96
    %s111 = sphi 0, %s97
    %s115 = sphi 0, %s115
    %s117 = sphi 0, %s115
    %s118 = sphi 0, %s117
    %s132 = sphi 0, %s118
    %s136 = sphi 0, %s136
    %s138 = sphi 0, %s136
    %s139 = sphi 0, %s138
    %s153 = sphi 0, %s139
    %s157 = sphi 0, %s157
    %s159 = sphi 0, %s157
    %s160 = sphi 0, %s159
    %s174 = sphi 0, %s160
    %s178 = sphi 0, %s178
    %s180 = sphi 0, %s178
    %s181 = sphi 0, %s180
    %s195 = sphi 0, %s181
    %s199 = sphi 0, %s199
    %s201 = sphi 0, %s199
    %s202 = sphi 0, %s201
    %s216 = sphi 0, %s202
    %s220 = sphi 0, %s220
    %s222 = sphi 0, %s220
    %s223 = sphi 0, %s222
    %s237 = sphi 0, %s223
    %s241 = sphi 0, %s241
    %s243 = sphi 0, %s241
    %s244 = sphi 0, %s243
    %s258 = sphi 0, %s244
    %s264 = sphi 0, %s266
    %s267 = sphi 0, %s264
    %s268 = sphi 0, %s267
    %s284 = sphi 0, %s268
  $region4: #{ncf_forward.1} parent=0 // loop_header_branch
    %21 = sbr.rel (%p19) target = $region8
  $region5: #{ncf_forward.1} parent=0 // loop_body
    %s23 = ssub.s32 %s18, 1
    %s24 = ssub.s32 %s18, 2
    %s25 = sadd.s32 %s18, 1
    %s26 = ssub.s32 %s18, %s25
    %p27 = scmp.eq.s32.totalorder %s26, 0
    %s29 = sadd.s32 %s28, 1
    %s30 = scalar_select %p27, %s28, %s29
    %p33 = pneg %p27
    %p34 = scmp.eq.s32.totalorder %s18, 1
    %p35 = por %p33, %p34
    %p36 = scmp.ne.s32.totalorder %s28, %s31
    %p37 = scmp.eq.s32.totalorder %s18, 0
    %p38 = por %p36, %p37
    %p39 = scmp.ne.s32.totalorder %s28, %s31
    %p40 = scmp.eq.s32.totalorder %s23, 1
    %p41 = por %p39, %p40
    %p42 = scmp.ne.s32.totalorder %s31, %s32
    %p43 = scmp.eq.s32.totalorder %s23, 0
    %p44 = por %p42, %p43
    %p45 = scmp.ne.s32.totalorder %s31, %s32
    %p46 = scmp.eq.s32.totalorder %s24, 1
    %p47 = por %p45, %p46
    %p49 = scmp.ne.s32.totalorder %s32, %s48
    %p50 = scmp.eq.s32.totalorder %s24, 0
    %p51 = por %p49, %p50
    %s53 = sadd.s32 %s52, 1
    %p56 = scmp.eq.s32.totalorder %s18, 1
    %p57 = scmp.ne.s32.totalorder %s52, %s54
    %p58 = scmp.eq.s32.totalorder %s18, 0
    %p59 = por %p57, %p58
    %p60 = scmp.ne.s32.totalorder %s52, %s54
    %p61 = scmp.eq.s32.totalorder %s23, 1
    %p62 = por %p60, %p61
    %p63 = scmp.ne.s32.totalorder %s54, %s55
    %p64 = scmp.eq.s32.totalorder %s23, 0
    %p65 = por %p63, %p64
    %p66 = scmp.ne.s32.totalorder %s54, %s55
    %p67 = scmp.eq.s32.totalorder %s24, 1
    %p68 = por %p66, %p67
    %p70 = scmp.ne.s32.totalorder %s55, %s69
    %p71 = scmp.eq.s32.totalorder %s24, 0
    %p72 = por %p70, %p71
    %s74 = sadd.s32 %s73, 1
    %p77 = scmp.eq.s32.totalorder %s18, 1
    %p78 = scmp.ne.s32.totalorder %s73, %s75
    %p79 = scmp.eq.s32.totalorder %s18, 0
    %p80 = por %p78, %p79
    %p81 = scmp.ne.s32.totalorder %s73, %s75
    %p82 = scmp.eq.s32.totalorder %s23, 1
    %p83 = por %p81, %p82
    %p84 = scmp.ne.s32.totalorder %s75, %s76
    %p85 = scmp.eq.s32.totalorder %s23, 0
    %p86 = por %p84, %p85
    %p87 = scmp.ne.s32.totalorder %s75, %s76
    %p88 = scmp.eq.s32.totalorder %s24, 1
    %p89 = por %p87, %p88
    %p91 = scmp.ne.s32.totalorder %s76, %s90
    %p92 = scmp.eq.s32.totalorder %s24, 0
    %p93 = por %p91, %p92
    %s95 = sadd.s32 %s94, 1
    %p98 = scmp.eq.s32.totalorder %s18, 1
    %p99 = scmp.ne.s32.totalorder %s94, %s96
    %p100 = scmp.eq.s32.totalorder %s18, 0
    %p101 = por %p99, %p100
    %p102 = scmp.ne.s32.totalorder %s94, %s96
    %p103 = scmp.eq.s32.totalorder %s23, 1
    %p104 = por %p102, %p103
    %p105 = scmp.ne.s32.totalorder %s96, %s97
    %p106 = scmp.eq.s32.totalorder %s23, 0
    %p107 = por %p105, %p106
    %p108 = scmp.ne.s32.totalorder %s96, %s97
    %p109 = scmp.eq.s32.totalorder %s24, 1
    %p110 = por %p108, %p109
    %p112 = scmp.ne.s32.totalorder %s97, %s111
    %p113 = scmp.eq.s32.totalorder %s24, 0
    %p114 = por %p112, %p113
    %s116 = sadd.s32 %s115, 1
    %p119 = scmp.eq.s32.totalorder %s18, 1
    %p120 = scmp.ne.s32.totalorder %s115, %s117
    %p121 = scmp.eq.s32.totalorder %s18, 0
    %p122 = por %p120, %p121
    %p123 = scmp.ne.s32.totalorder %s115, %s117
    %p124 = scmp.eq.s32.totalorder %s23, 1
    %p125 = por %p123, %p124
    %p126 = scmp.ne.s32.totalorder %s117, %s118
    %p127 = scmp.eq.s32.totalorder %s23, 0
    %p128 = por %p126, %p127
    %p129 = scmp.ne.s32.totalorder %s117, %s118
    %p130 = scmp.eq.s32.totalorder %s24, 1
    %p131 = por %p129, %p130
    %p133 = scmp.ne.s32.totalorder %s118, %s132
    %p134 = scmp.eq.s32.totalorder %s24, 0
    %p135 = por %p133, %p134
    %s137 = sadd.s32 %s136, 1
    %p140 = scmp.eq.s32.totalorder %s18, 1
    %p141 = scmp.ne.s32.totalorder %s136, %s138
    %p142 = scmp.eq.s32.totalorder %s18, 0
    %p143 = por %p141, %p142
    %p144 = scmp.ne.s32.totalorder %s136, %s138
    %p145 = scmp.eq.s32.totalorder %s23, 1
    %p146 = por %p144, %p145
    %p147 = scmp.ne.s32.totalorder %s138, %s139
    %p148 = scmp.eq.s32.totalorder %s23, 0
    %p149 = por %p147, %p148
    %p150 = scmp.ne.s32.totalorder %s138, %s139
    %p151 = scmp.eq.s32.totalorder %s24, 1
    %p152 = por %p150, %p151
    %p154 = scmp.ne.s32.totalorder %s139, %s153
    %p155 = scmp.eq.s32.totalorder %s24, 0
    %p156 = por %p154, %p155
    %s158 = sadd.s32 %s157, 1
    %p161 = scmp.eq.s32.totalorder %s18, 1
    %p162 = scmp.ne.s32.totalorder %s157, %s159
    %p163 = scmp.eq.s32.totalorder %s18, 0
    %p164 = por %p162, %p163
    %p165 = scmp.ne.s32.totalorder %s157, %s159
    %p166 = scmp.eq.s32.totalorder %s23, 1
    %p167 = por %p165, %p166
    %p168 = scmp.ne.s32.totalorder %s159, %s160
    %p169 = scmp.eq.s32.totalorder %s23, 0
    %p170 = por %p168, %p169
    %p171 = scmp.ne.s32.totalorder %s159, %s160
    %p172 = scmp.eq.s32.totalorder %s24, 1
    %p173 = por %p171, %p172
    %p175 = scmp.ne.s32.totalorder %s160, %s174
    %p176 = scmp.eq.s32.totalorder %s24, 0
    %p177 = por %p175, %p176
    %s179 = sadd.s32 %s178, 1
    %p182 = scmp.eq.s32.totalorder %s18, 1
    %p183 = scmp.ne.s32.totalorder %s178, %s180
    %p184 = scmp.eq.s32.totalorder %s18, 0
    %p185 = por %p183, %p184
    %p186 = scmp.ne.s32.totalorder %s178, %s180
    %p187 = scmp.eq.s32.totalorder %s23, 1
    %p188 = por %p186, %p187
    %p189 = scmp.ne.s32.totalorder %s180, %s181
    %p190 = scmp.eq.s32.totalorder %s23, 0
    %p191 = por %p189, %p190
    %p192 = scmp.ne.s32.totalorder %s180, %s181
    %p193 = scmp.eq.s32.totalorder %s24, 1
    %p194 = por %p192, %p193
    %p196 = scmp.ne.s32.totalorder %s181, %s195
    %p197 = scmp.eq.s32.totalorder %s24, 0
    %p198 = por %p196, %p197
    %s200 = sadd.s32 %s199, 1
    %p203 = scmp.eq.s32.totalorder %s18, 1
    %p204 = scmp.ne.s32.totalorder %s199, %s201
    %p205 = scmp.eq.s32.totalorder %s18, 0
    %p206 = por %p204, %p205
    %p207 = scmp.ne.s32.totalorder %s199, %s201
    %p208 = scmp.eq.s32.totalorder %s23, 1
    %p209 = por %p207, %p208
    %p210 = scmp.ne.s32.totalorder %s201, %s202
    %p211 = scmp.eq.s32.totalorder %s23, 0
    %p212 = por %p210, %p211
    %p213 = scmp.ne.s32.totalorder %s201, %s202
    %p214 = scmp.eq.s32.totalorder %s24, 1
    %p215 = por %p213, %p214
    %p217 = scmp.ne.s32.totalorder %s202, %s216
    %p218 = scmp.eq.s32.totalorder %s24, 0
    %p219 = por %p217, %p218
    %s221 = sadd.s32 %s220, 1
    %p224 = scmp.eq.s32.totalorder %s18, 1
    %p225 = scmp.ne.s32.totalorder %s220, %s222
    %p226 = scmp.eq.s32.totalorder %s18, 0
    %p227 = por %p225, %p226
    %p228 = scmp.ne.s32.totalorder %s220, %s222
    %p229 = scmp.eq.s32.totalorder %s23, 1
    %p230 = por %p228, %p229
    %p231 = scmp.ne.s32.totalorder %s222, %s223
    %p232 = scmp.eq.s32.totalorder %s23, 0
    %p233 = por %p231, %p232
    %p234 = scmp.ne.s32.totalorder %s222, %s223
    %p235 = scmp.eq.s32.totalorder %s24, 1
    %p236 = por %p234, %p235
    %p238 = scmp.ne.s32.totalorder %s223, %s237
    %p239 = scmp.eq.s32.totalorder %s24, 0
    %p240 = por %p238, %p239
    %s242 = sadd.s32 %s241, 1
    %p245 = scmp.eq.s32.totalorder %s18, 1
    %p246 = scmp.ne.s32.totalorder %s241, %s243
    %p247 = scmp.eq.s32.totalorder %s18, 0
    %p248 = por %p246, %p247
    %p249 = scmp.ne.s32.totalorder %s241, %s243
    %p250 = scmp.eq.s32.totalorder %s23, 1
    %p251 = por %p249, %p250
    %p252 = scmp.ne.s32.totalorder %s243, %s244
    %p253 = scmp.eq.s32.totalorder %s23, 0
    %p254 = por %p252, %p253
    %p255 = scmp.ne.s32.totalorder %s243, %s244
    %p256 = scmp.eq.s32.totalorder %s24, 1
    %p257 = por %p255, %p256
    %p259 = scmp.ne.s32.totalorder %s244, %s258
    %p260 = scmp.eq.s32.totalorder %s24, 0
    %p261 = por %p259, %p260
    %s262 = ssub.s32 %s18, %s25
    %p263 = scmp.eq.s32.totalorder %s262, 0
    %s265 = sadd.s32 %s264, 1
    %s266 = scalar_select %p263, %s264, %s265
    %p269 = pneg %p263
    %p270 = scmp.eq.s32.totalorder %s18, 1
    %p271 = por %p269, %p270
    %p272 = scmp.ne.s32.totalorder %s264, %s267
    %p273 = scmp.eq.s32.totalorder %s18, 0
    %p274 = por %p272, %p273
    %p275 = scmp.ne.s32.totalorder %s264, %s267
    %p276 = scmp.eq.s32.totalorder %s23, 1
    %p277 = por %p275, %p276
    %p278 = scmp.ne.s32.totalorder %s267, %s268
    %p279 = scmp.eq.s32.totalorder %s23, 0
    %p280 = por %p278, %p279
    %p281 = scmp.ne.s32.totalorder %s267, %s268
    %p282 = scmp.eq.s32.totalorder %s24, 1
    %p283 = por %p281, %p282
    %p285 = scmp.ne.s32.totalorder %s268, %s284
    %p286 = scmp.eq.s32.totalorder %s24, 0
    %p287 = por %p285, %p286
    %p288 = scmp.le.s32.totalorder 1, %s18
    %p289 = scmp.lt.s32.totalorder %s18, 3
    %p290 = pnand %p288, %p289
    %p291 = pneg %p290
    // Predicated region
    $region9: #{ncf_forward.1} parent=5 // pred_check
      _
    $region10: #{ncf_forward.1} parent=5 // pred_check_branch
      %293 = sbr.rel (%p290) target = $region12
    $region11: #{ncf_forward.1} parent=5 // pred_region
      %s294 = ssub.s32 %s18, 1
      // Predicated region
      $region13: #{ncf_forward.1} parent=11 // pred_check
        %p295 = pneg %p65
      $region14: #{ncf_forward.1} parent=11 // pred_check_branch
        %297 = sbr.rel (%p295) target = $region16
      $region15: #{ncf_forward.1} parent=11 // pred_region
        _
      $region16: #{ncf_forward.1} parent=11 // pred_fallthru
        _
      // Predicated region
      $region17: #{ncf_forward.1} parent=11 // pred_check
        %p298 = pneg %p86
      $region18: #{ncf_forward.1} parent=11 // pred_check_branch
        %300 = sbr.rel (%p298) target = $region20
      $region19: #{ncf_forward.1} parent=11 // pred_region
        _
      $region20: #{ncf_forward.1} parent=11 // pred_fallthru
        _
      // Predicated region
      $region21: #{ncf_forward.1} parent=11 // pred_check
        %p301 = pneg %p107
      $region22: #{ncf_forward.1} parent=11 // pred_check_branch
        %303 = sbr.rel (%p301) target = $region24
      $region23: #{ncf_forward.1} parent=11 // pred_region
        _
      $region24: #{ncf_forward.1} parent=11 // pred_fallthru
        _
      // Predicated region
      $region25: #{ncf_forward.1} parent=11 // pred_check
        %p304 = pneg %p128
      $region26: #{ncf_forward.1} parent=11 // pred_check_branch
        %306 = sbr.rel (%p304) target = $region28
      $region27: #{ncf_forward.1} parent=11 // pred_region
        _
      $region28: #{ncf_forward.1} parent=11 // pred_fallthru
        _
      // Predicated region
      $region29: #{ncf_forward.1} parent=11 // pred_check
        %p307 = pneg %p149
      $region30: #{ncf_forward.1} parent=11 // pred_check_branch
        %309 = sbr.rel (%p307) target = $region32
      $region31: #{ncf_forward.1} parent=11 // pred_region
        _
      $region32: #{ncf_forward.1} parent=11 // pred_fallthru
        _
      // Predicated region
      $region33: #{ncf_forward.1} parent=11 // pred_check
        %p310 = pneg %p170
      $region34: #{ncf_forward.1} parent=11 // pred_check_branch
        %312 = sbr.rel (%p310) target = $region36
      $region35: #{ncf_forward.1} parent=11 // pred_region
        _
      $region36: #{ncf_forward.1} parent=11 // pred_fallthru
        _
      // Predicated region
      $region37: #{ncf_forward.1} parent=11 // pred_check
        %p313 = pneg %p191
      $region38: #{ncf_forward.1} parent=11 // pred_check_branch
        %315 = sbr.rel (%p313) target = $region40
      $region39: #{ncf_forward.1} parent=11 // pred_region
        _
      $region40: #{ncf_forward.1} parent=11 // pred_fallthru
        _
      // Predicated region
      $region41: #{ncf_forward.1} parent=11 // pred_check
        %p316 = pneg %p212
      $region42: #{ncf_forward.1} parent=11 // pred_check_branch
        %318 = sbr.rel (%p316) target = $region44
      $region43: #{ncf_forward.1} parent=11 // pred_region
        _
      $region44: #{ncf_forward.1} parent=11 // pred_fallthru
        _
      // Predicated region
      $region45: #{ncf_forward.1} parent=11 // pred_check
        %p319 = pneg %p233
      $region46: #{ncf_forward.1} parent=11 // pred_check_branch
        %321 = sbr.rel (%p319) target = $region48
      $region47: #{ncf_forward.1} parent=11 // pred_region
        _
      $region48: #{ncf_forward.1} parent=11 // pred_fallthru
        _
      // Predicated region
      $region49: #{ncf_forward.1} parent=11 // pred_check
        %p322 = pneg %p254
      $region50: #{ncf_forward.1} parent=11 // pred_check_branch
        %324 = sbr.rel (%p322) target = $region52
      $region51: #{ncf_forward.1} parent=11 // pred_region
        _
      $region52: #{ncf_forward.1} parent=11 // pred_fallthru
        _
    $region12: #{ncf_forward.1} parent=5 // pred_fallthru
      _
    %p325 = scmp.lt.s32.totalorder %s18, 2
    // Predicated region
    $region53: #{ncf_forward.1} parent=5 // pred_check
      %p326 = pneg %p325
    $region54: #{ncf_forward.1} parent=5 // pred_check_branch
      %328 = sbr.rel (%p326) target = $region56
    $region55: #{ncf_forward.1} parent=5 // pred_region
      // Predicated region
      $region57: #{ncf_forward.1} parent=55 // pred_check
        %p329 = pneg %p38
      $region58: #{ncf_forward.1} parent=55 // pred_check_branch
        %331 = sbr.rel (%p329) target = $region60
      $region59: #{ncf_forward.1} parent=55 // pred_region
        %s332 = smul.u32 16, %s18
        %p333 = scmp.lt.s32.totalorder %s332, 31
        %s334 = scalar_select %p333, %s332, 31
        %s335 = smul.addr %s334, 2
        %s336 = smul.addr %s335, 4
        %s337 = scalar_lea.vmem %s0, %s336
        %s338 = smul.u32 16, %s18
      $region60: #{ncf_forward.1} parent=55 // pred_fallthru
        _
    $region56: #{ncf_forward.1} parent=5 // pred_fallthru
      _
    %p339 = scmp.le.s32.totalorder 1, %s18
    %p340 = scmp.lt.s32.totalorder %s18, 3
    %p341 = pnand %p339, %p340
    %p342 = pneg %p341
    // Predicated region
    $region61: #{ncf_forward.1} parent=5 // pred_check
      _
    $region62: #{ncf_forward.1} parent=5 // pred_check_branch
      %344 = sbr.rel (%p341) target = $region64
    $region63: #{ncf_forward.1} parent=5 // pred_region
      %s345 = ssub.s32 %s18, 1
      %s346 = smul.u32 16, %s23
      %p347 = scmp.lt.s32.totalorder %s346, 31
      %s348 = scalar_select %p347, %s346, 31
      %s349 = smul.addr %s348, 2
      %s350 = smul.addr %s349, 4
      %s351 = scalar_lea.vmem %s0, %s350
      %p352 = pneg %p44
      %p353 = pneg %p41
      %p354 = pneg %p65
      %p355 = pneg %p62
      %p356 = pneg %p86
      %p357 = pneg %p83
      %p358 = pneg %p107
      %p359 = pneg %p104
      %p360 = pneg %p128
      %p361 = pneg %p125
      %p362 = pneg %p149
      %p363 = pneg %p146
      %p364 = pneg %p170
      %p365 = pneg %p167
      %p366 = pneg %p191
      %p367 = pneg %p188
      %p368 = pneg %p212
      %p369 = pneg %p209
      %p370 = pneg %p233
      %p371 = pneg %p230
      %p372 = pneg %p254
      %p373 = pneg %p251
      %p374 = pneg %p280
      %p375 = pneg %p277
      %p376 = scmp.lt.s32.totalorder %s23, 1
      %s377 = scalar_select %p376, %s23, 1
      %s378 = smul.addr %s377, 2
      %s379 = scalar_lea.vmem %s11, %s378
      %s380 = smul.u32 16, %s23
      %p381 = scmp.lt.s32.totalorder %s380, 31
      %s382 = scalar_select %p381, %s380, 31
      %s383 = smul.addr %s382, 2
      %s384 = smul.addr %s383, 4
      %s385 = scalar_lea.vmem %s0, %s384
      %s386 = smul.u32 16, %s23
      %p387 = scmp.lt.s32.totalorder %s23, 1
      %s388 = scalar_select %p387, %s23, 1
      %s389 = smul.addr %s388, 2
      %s390 = scalar_lea.vmem %s11, %s389
      %v391 = vld [vmem:[%s385] sm:$0xff]
      %v392 = vld [vmem:[%s385 + $0x8] sm:$0xff]
      %v393 = vld [vmem:[%s385 + $0x10] sm:$0xff]
      %v394 = vld [vmem:[%s385 + $0x18] sm:$0xff]
      %v395 = vld [vmem:[%s385 + $0x20] sm:$0xff]
      %v396 = vld [vmem:[%s385 + $0x28] sm:$0xff]
      %v397 = vld [vmem:[%s385 + $0x30] sm:$0xff]
      %v398 = vld [vmem:[%s385 + $0x38] sm:$0xff]
      %v399 = vld [vmem:[%s385 + $0x40] sm:$0xff]
      %v400 = vld [vmem:[%s385 + $0x48] sm:$0xff]
      %v401 = vld [vmem:[%s385 + $0x50] sm:$0xff]
      %v402 = vld [vmem:[%s385 + $0x58] sm:$0xff]
      %v403 = vld [vmem:[%s385 + $0x60] sm:$0xff]
      %v404 = vld [vmem:[%s385 + $0x68] sm:$0xff]
      %v405 = vld [vmem:[%s385 + $0x70] sm:$0xff]
      %v406 = vld [vmem:[%s385 + $0x78] sm:$0xff]
      %v407 = vld [vmem:[%s2] sm:$0xff]
      %v408 = vld [vmem:[%s2 + $0x8] sm:$0xff]
      %v409 = vld [vmem:[%s2 + $0x10] sm:$0xff]
      %v410 = vld [vmem:[%s2 + $0x18] sm:$0xff]
      %v411 = vld [vmem:[%s2 + $0x20] sm:$0xff]
      %v412 = vld [vmem:[%s2 + $0x28] sm:$0xff]
      %v413 = vld [vmem:[%s2 + $0x30] sm:$0xff]
      %v414 = vld [vmem:[%s2 + $0x38] sm:$0xff]
      %v415 = vld [vmem:[%s2 + $0x40] sm:$0xff]
      %v416 = vld [vmem:[%s2 + $0x48] sm:$0xff]
      %v417 = vld [vmem:[%s2 + $0x50] sm:$0xff]
      %v418 = vld [vmem:[%s2 + $0x58] sm:$0xff]
      %v419 = vld [vmem:[%s2 + $0x60] sm:$0xff]
      %v420 = vld [vmem:[%s2 + $0x68] sm:$0xff]
      %v421 = vld [vmem:[%s2 + $0x70] sm:$0xff]
      %v422 = vld [vmem:[%s2 + $0x78] sm:$0xff]
      %v423 = vld [vmem:[%s2 + $0x80] sm:$0xff]
      %v424 = vld [vmem:[%s2 + $0x88] sm:$0xff]
      %v425 = vld [vmem:[%s2 + $0x90] sm:$0xff]
      %v426 = vld [vmem:[%s2 + $0x98] sm:$0xff]
      %v427 = vld [vmem:[%s2 + $0xa0] sm:$0xff]
      %v428 = vld [vmem:[%s2 + $0xa8] sm:$0xff]
      %v429 = vld [vmem:[%s2 + $0xb0] sm:$0xff]
      %v430 = vld [vmem:[%s2 + $0xb8] sm:$0xff]
      %v431 = vld [vmem:[%s2 + $0xc0] sm:$0xff]
      %v432 = vld [vmem:[%s2 + $0xc8] sm:$0xff]
      %v433 = vld [vmem:[%s2 + $0xd0] sm:$0xff]
      %v434 = vld [vmem:[%s2 + $0xd8] sm:$0xff]
      %v435 = vld [vmem:[%s2 + $0xe0] sm:$0xff]
      %v436 = vld [vmem:[%s2 + $0xe8] sm:$0xff]
      %v437 = vld [vmem:[%s2 + $0xf0] sm:$0xff]
      %v438 = vld [vmem:[%s2 + $0xf8] sm:$0xff]
      %v439 = vld [vmem:[%s3] sm:$0x3]
      %v441 = vlaneseq
      %v442 = vshrl.u32 %v441, 7
      %v443 = vsub.s32 0, %v442
      %v444 = vrot.slane %v439, %v443
      %v445 = vlaneseq
      %v446 = vshrl.u32 %v445, 7
      %v447 = vsub.s32 1, %v446
      %v448 = vrot.slane %v439, %v447
      %v467 = vunpack.c.l.b16 %v391
      %v468 = vunpack.c.h.b16 %v391
      %v469 = vunpack.c.l.b16 %v392
      %v470 = vunpack.c.h.b16 %v392
      %v471 = vunpack.c.l.b16 %v393
      %v472 = vunpack.c.h.b16 %v393
      %v473 = vunpack.c.l.b16 %v394
      %v474 = vunpack.c.h.b16 %v394
      %v475 = vunpack.c.l.b16 %v395
      %v476 = vunpack.c.h.b16 %v395
      %v477 = vunpack.c.l.b16 %v396
      %v478 = vunpack.c.h.b16 %v396
      %v479 = vunpack.c.l.b16 %v397
      %v480 = vunpack.c.h.b16 %v397
      %v481 = vunpack.c.l.b16 %v398
      %v482 = vunpack.c.h.b16 %v398
      %v483 = vunpack.c.l.b16 %v399
      %v484 = vunpack.c.h.b16 %v399
      %v485 = vunpack.c.l.b16 %v400
      %v486 = vunpack.c.h.b16 %v400
      %v487 = vunpack.c.l.b16 %v401
      %v488 = vunpack.c.h.b16 %v401
      %v489 = vunpack.c.l.b16 %v402
      %v490 = vunpack.c.h.b16 %v402
      %v491 = vunpack.c.l.b16 %v403
      %v492 = vunpack.c.h.b16 %v403
      %v493 = vunpack.c.l.b16 %v404
      %v494 = vunpack.c.h.b16 %v404
      %v495 = vunpack.c.l.b16 %v405
      %v496 = vunpack.c.h.b16 %v405
      %v497 = vunpack.c.l.b16 %v406
      %v498 = vunpack.c.h.b16 %v406
      %v499 = vpack.c.b16 %v469, %v467
      %v500 = vpack.c.b16 %v470, %v468
      %v501 = vpack.c.b16 %v473, %v471
      %v502 = vpack.c.b16 %v474, %v472
      %v503 = vpack.c.b16 %v477, %v475
      %v504 = vpack.c.b16 %v478, %v476
      %v505 = vpack.c.b16 %v481, %v479
      %v506 = vpack.c.b16 %v482, %v480
      %v507 = vpack.c.b16 %v485, %v483
      %v508 = vpack.c.b16 %v486, %v484
      %v509 = vpack.c.b16 %v489, %v487
      %v510 = vpack.c.b16 %v490, %v488
      %v511 = vpack.c.b16 %v493, %v491
      %v512 = vpack.c.b16 %v494, %v492
      %v513 = vpack.c.b16 %v497, %v495
      %v514 = vpack.c.b16 %v498, %v496
      %v563 = vunpack.c.l.b16 %v407
      %v564 = vunpack.c.h.b16 %v407
      %v565 = vunpack.c.l.b16 %v408
      %v566 = vunpack.c.h.b16 %v408
      %v567 = vunpack.c.l.b16 %v409
      %v568 = vunpack.c.h.b16 %v409
      %v569 = vunpack.c.l.b16 %v410
      %v570 = vunpack.c.h.b16 %v410
      %v571 = vunpack.c.l.b16 %v411
      %v572 = vunpack.c.h.b16 %v411
      %v573 = vunpack.c.l.b16 %v412
      %v574 = vunpack.c.h.b16 %v412
      %v575 = vunpack.c.l.b16 %v413
      %v576 = vunpack.c.h.b16 %v413
      %v577 = vunpack.c.l.b16 %v414
      %v578 = vunpack.c.h.b16 %v414
      %v579 = vunpack.c.l.b16 %v415
      %v580 = vunpack.c.h.b16 %v415
      %v581 = vunpack.c.l.b16 %v416
      %v582 = vunpack.c.h.b16 %v416
      %v583 = vunpack.c.l.b16 %v417
      %v584 = vunpack.c.h.b16 %v417
      %v585 = vunpack.c.l.b16 %v418
      %v586 = vunpack.c.h.b16 %v418
      %v587 = vunpack.c.l.b16 %v419
      %v588 = vunpack.c.h.b16 %v419
      %v589 = vunpack.c.l.b16 %v420
      %v590 = vunpack.c.h.b16 %v420
      %v591 = vunpack.c.l.b16 %v421
      %v592 = vunpack.c.h.b16 %v421
      %v593 = vunpack.c.l.b16 %v422
      %v594 = vunpack.c.h.b16 %v422
      %v595 = vunpack.c.l.b16 %v423
      %v596 = vunpack.c.h.b16 %v423
      %v597 = vunpack.c.l.b16 %v424
      %v598 = vunpack.c.h.b16 %v424
      %v599 = vunpack.c.l.b16 %v425
      %v600 = vunpack.c.h.b16 %v425
      %v601 = vunpack.c.l.b16 %v426
      %v602 = vunpack.c.h.b16 %v426
      %v603 = vunpack.c.l.b16 %v427
      %v604 = vunpack.c.h.b16 %v427
      %v605 = vunpack.c.l.b16 %v428
      %v606 = vunpack.c.h.b16 %v428
      %v607 = vunpack.c.l.b16 %v429
      %v608 = vunpack.c.h.b16 %v429
      %v609 = vunpack.c.l.b16 %v430
      %v610 = vunpack.c.h.b16 %v430
      %v611 = vunpack.c.l.b16 %v431
      %v612 = vunpack.c.h.b16 %v431
      %v613 = vunpack.c.l.b16 %v432
      %v614 = vunpack.c.h.b16 %v432
      %v615 = vunpack.c.l.b16 %v433
      %v616 = vunpack.c.h.b16 %v433
      %v617 = vunpack.c.l.b16 %v434
      %v618 = vunpack.c.h.b16 %v434
      %v619 = vunpack.c.l.b16 %v435
      %v620 = vunpack.c.h.b16 %v435
      %v621 = vunpack.c.l.b16 %v436
      %v622 = vunpack.c.h.b16 %v436
      %v623 = vunpack.c.l.b16 %v437
      %v624 = vunpack.c.h.b16 %v437
      %v625 = vunpack.c.l.b16 %v438
      %v626 = vunpack.c.h.b16 %v438
      %v627 = vpack.c.b16 %v565, %v563
      %v628 = vpack.c.b16 %v566, %v564
      %v629 = vpack.c.b16 %v569, %v567
      %v630 = vpack.c.b16 %v570, %v568
      %v631 = vpack.c.b16 %v573, %v571
      %v632 = vpack.c.b16 %v574, %v572
      %v633 = vpack.c.b16 %v577, %v575
      %v634 = vpack.c.b16 %v578, %v576
      %v635 = vpack.c.b16 %v581, %v579
      %v636 = vpack.c.b16 %v582, %v580
      %v637 = vpack.c.b16 %v585, %v583
      %v638 = vpack.c.b16 %v586, %v584
      %v639 = vpack.c.b16 %v589, %v587
      %v640 = vpack.c.b16 %v590, %v588
      %v641 = vpack.c.b16 %v593, %v591
      %v642 = vpack.c.b16 %v594, %v592
      %v643 = vpack.c.b16 %v597, %v595
      %v644 = vpack.c.b16 %v598, %v596
      %v645 = vpack.c.b16 %v601, %v599
      %v646 = vpack.c.b16 %v602, %v600
      %v647 = vpack.c.b16 %v605, %v603
      %v648 = vpack.c.b16 %v606, %v604
      %v649 = vpack.c.b16 %v609, %v607
      %v650 = vpack.c.b16 %v610, %v608
      %v651 = vpack.c.b16 %v613, %v611
      %v652 = vpack.c.b16 %v614, %v612
      %v653 = vpack.c.b16 %v617, %v615
      %v654 = vpack.c.b16 %v618, %v616
      %v655 = vpack.c.b16 %v621, %v619
      %v656 = vpack.c.b16 %v622, %v620
      %v657 = vpack.c.b16 %v625, %v623
      %v658 = vpack.c.b16 %v626, %v624
      %691 = vmatprep.subr.bf16.mxu0 %v642
      %692 = vmatpush1.bf16.msra.mxu0 %v641
      %693 = vmatprep.subr.bf16.mxu0 %v640
      %694 = vmatpush1.bf16.msra.mxu0 %v639
      %695 = vmatprep.subr.bf16.mxu0 %v638
      %696 = vmatpush1.bf16.msra.mxu0 %v637
      %697 = vmatprep.subr.bf16.mxu0 %v636
      %698 = vmatpush1.bf16.msra.mxu0 %v635
      %699 = vmatprep.subr.bf16.mxu0 %v634
      %700 = vmatpush1.bf16.msra.mxu0 %v633
      %701 = vmatprep.subr.bf16.mxu0 %v632
      %702 = vmatpush1.bf16.msra.mxu0 %v631
      %703 = vmatprep.subr.bf16.mxu0 %v630
      %704 = vmatpush1.bf16.msra.mxu0 %v629
      %705 = vmatprep.subr.bf16.mxu0 %v628
      %706 = vmatpush1.bf16.msra.mxu0 %v627
      %707 = vmatprep.subr.bf16.mxu0 %v658
      %708 = vmatpush2.bf16.msra.mxu0 %v657
      %709 = vmatprep.subr.bf16.mxu0 %v656
      %710 = vmatpush2.bf16.msra.mxu0 %v655
      %711 = vmatprep.subr.bf16.mxu0 %v654
      %712 = vmatpush2.bf16.msra.mxu0 %v653
      %713 = vmatprep.subr.bf16.mxu0 %v652
      %714 = vmatpush2.bf16.msra.mxu0 %v651
      %715 = vmatprep.subr.bf16.mxu0 %v650
      %716 = vmatpush2.bf16.msra.mxu0 %v649
      %717 = vmatprep.subr.bf16.mxu0 %v648
      %718 = vmatpush2.bf16.msra.mxu0 %v647
      %719 = vmatprep.subr.bf16.mxu0 %v646
      %720 = vmatpush2.bf16.msra.mxu0 %v645
      %721 = vmatprep.subr.bf16.mxu0 %v644
      %722 = vmatpush2.bf16.msra.mxu0 %v643
      %723 = vmatprep.mubr.bf16.mxu0 %v500
      %724 = vmatmul.mubr.bf16.gmra.mxu0 %v499
      %v725 = vpop.f32.mrf.mxu0
      %v726 = vadd.f32 %v444, %v725
      %v727 = vpop.f32.mrf.mxu0
      %v728 = vadd.f32 %v448, %v727
      %v729 = vpop.f32.mrf.mxu0
      %v730 = vadd.f32 %v444, %v729
      %v731 = vpop.f32.mrf.mxu0
      %v732 = vadd.f32 %v448, %v731
      %733 = vmatprep.mubr.bf16.mxu0 %v502
      %734 = vmatmul.mubr.bf16.gmra.mxu0 %v501
      %v735 = vpop.f32.mrf.mxu0
      %v736 = vadd.f32 %v444, %v735
      %v737 = vpop.f32.mrf.mxu0
      %v738 = vadd.f32 %v448, %v737
      %v739 = vpop.f32.mrf.mxu0
      %v740 = vadd.f32 %v444, %v739
      %v741 = vpop.f32.mrf.mxu0
      %v742 = vadd.f32 %v448, %v741
      %743 = vmatprep.mubr.bf16.mxu0 %v504
      %744 = vmatmul.mubr.bf16.gmra.mxu0 %v503
      %v745 = vpop.f32.mrf.mxu0
      %v746 = vadd.f32 %v444, %v745
      %v747 = vpop.f32.mrf.mxu0
      %v748 = vadd.f32 %v448, %v747
      %v749 = vpop.f32.mrf.mxu0
      %v750 = vadd.f32 %v444, %v749
      %v751 = vpop.f32.mrf.mxu0
      %v752 = vadd.f32 %v448, %v751
      %753 = vmatprep.mubr.bf16.mxu0 %v506
      %754 = vmatmul.mubr.bf16.gmra.mxu0 %v505
      %v755 = vpop.f32.mrf.mxu0
      %v756 = vadd.f32 %v444, %v755
      %v757 = vpop.f32.mrf.mxu0
      %v758 = vadd.f32 %v448, %v757
      %v759 = vpop.f32.mrf.mxu0
      %v760 = vadd.f32 %v444, %v759
      %v761 = vpop.f32.mrf.mxu0
      %v762 = vadd.f32 %v448, %v761
      %763 = vmatprep.mubr.bf16.mxu0 %v508
      %764 = vmatmul.mubr.bf16.gmra.mxu0 %v507
      %v765 = vpop.f32.mrf.mxu0
      %v766 = vadd.f32 %v444, %v765
      %v767 = vpop.f32.mrf.mxu0
      %v768 = vadd.f32 %v448, %v767
      %v769 = vpop.f32.mrf.mxu0
      %v770 = vadd.f32 %v444, %v769
      %v771 = vpop.f32.mrf.mxu0
      %v772 = vadd.f32 %v448, %v771
      %773 = vmatprep.mubr.bf16.mxu0 %v510
      %774 = vmatmul.mubr.bf16.gmra.mxu0 %v509
      %v775 = vpop.f32.mrf.mxu0
      %v776 = vadd.f32 %v444, %v775
      %v777 = vpop.f32.mrf.mxu0
      %v778 = vadd.f32 %v448, %v777
      %v779 = vpop.f32.mrf.mxu0
      %v780 = vadd.f32 %v444, %v779
      %v781 = vpop.f32.mrf.mxu0
      %v782 = vadd.f32 %v448, %v781
      %783 = vmatprep.mubr.bf16.mxu0 %v512
      %784 = vmatmul.mubr.bf16.gmra.mxu0 %v511
      %v785 = vpop.f32.mrf.mxu0
      %v786 = vadd.f32 %v444, %v785
      %v787 = vpop.f32.mrf.mxu0
      %v788 = vadd.f32 %v448, %v787
      %v789 = vpop.f32.mrf.mxu0
      %v790 = vadd.f32 %v444, %v789
      %v791 = vpop.f32.mrf.mxu0
      %v792 = vadd.f32 %v448, %v791
      %793 = vmatprep.mubr.bf16.mxu0 %v514
      %794 = vmatmul.mubr.bf16.gmra.mxu0 %v513
      %v795 = vpop.f32.mrf.mxu0
      %v796 = vadd.f32 %v444, %v795
      %v797 = vpop.f32.mrf.mxu0
      %v798 = vadd.f32 %v448, %v797
      %v799 = vpop.f32.mrf.mxu0
      %v800 = vadd.f32 %v444, %v799
      %v801 = vpop.f32.mrf.mxu0
      %v802 = vadd.f32 %v448, %v801
      %803 = vdwg.mxu0
      %v804 = vmax.f32 %v726, 0.0
      %v805 = vmax.f32 %v728, 0.0
      %v806 = vmax.f32 %v730, 0.0
      %v807 = vmax.f32 %v732, 0.0
      %v808 = vmax.f32 %v736, 0.0
      %v809 = vmax.f32 %v738, 0.0
      %v810 = vmax.f32 %v740, 0.0
      %v811 = vmax.f32 %v742, 0.0
      %v812 = vmax.f32 %v746, 0.0
      %v813 = vmax.f32 %v748, 0.0
      %v814 = vmax.f32 %v750, 0.0
      %v815 = vmax.f32 %v752, 0.0
      %v816 = vmax.f32 %v756, 0.0
      %v817 = vmax.f32 %v758, 0.0
      %v818 = vmax.f32 %v760, 0.0
      %v819 = vmax.f32 %v762, 0.0
      %v820 = vmax.f32 %v766, 0.0
      %v821 = vmax.f32 %v768, 0.0
      %v822 = vmax.f32 %v770, 0.0
      %v823 = vmax.f32 %v772, 0.0
      %v824 = vmax.f32 %v776, 0.0
      %v825 = vmax.f32 %v778, 0.0
      %v826 = vmax.f32 %v780, 0.0
      %v827 = vmax.f32 %v782, 0.0
      %v828 = vmax.f32 %v786, 0.0
      %v829 = vmax.f32 %v788, 0.0
      %v830 = vmax.f32 %v790, 0.0
      %v831 = vmax.f32 %v792, 0.0
      %v832 = vmax.f32 %v796, 0.0
      %v833 = vmax.f32 %v798, 0.0
      %v834 = vmax.f32 %v800, 0.0
      %v835 = vmax.f32 %v802, 0.0
      %v836 = vpack.c.bf16 %v806, %v804
      %v837 = vpack.c.bf16 %v807, %v805
      %v838 = vpack.c.bf16 %v810, %v808
      %v839 = vpack.c.bf16 %v811, %v809
      %v840 = vpack.c.bf16 %v814, %v812
      %v841 = vpack.c.bf16 %v815, %v813
      %v842 = vpack.c.bf16 %v818, %v816
      %v843 = vpack.c.bf16 %v819, %v817
      %v844 = vpack.c.bf16 %v822, %v820
      %v845 = vpack.c.bf16 %v823, %v821
      %v846 = vpack.c.bf16 %v826, %v824
      %v847 = vpack.c.bf16 %v827, %v825
      %v848 = vpack.c.bf16 %v830, %v828
      %v849 = vpack.c.bf16 %v831, %v829
      %v850 = vpack.c.bf16 %v834, %v832
      %v851 = vpack.c.bf16 %v835, %v833
      %v852 = vld [vmem:[%s4] sm:$0xff]
      %v853 = vld [vmem:[%s4 + $0x8] sm:$0xff]
      %v854 = vld [vmem:[%s4 + $0x10] sm:$0xff]
      %v855 = vld [vmem:[%s4 + $0x18] sm:$0xff]
      %v856 = vld [vmem:[%s4 + $0x20] sm:$0xff]
      %v857 = vld [vmem:[%s4 + $0x28] sm:$0xff]
      %v858 = vld [vmem:[%s4 + $0x30] sm:$0xff]
      %v859 = vld [vmem:[%s4 + $0x38] sm:$0xff]
      %v860 = vld [vmem:[%s4 + $0x40] sm:$0xff]
      %v861 = vld [vmem:[%s4 + $0x48] sm:$0xff]
      %v862 = vld [vmem:[%s4 + $0x50] sm:$0xff]
      %v863 = vld [vmem:[%s4 + $0x58] sm:$0xff]
      %v864 = vld [vmem:[%s4 + $0x60] sm:$0xff]
      %v865 = vld [vmem:[%s4 + $0x68] sm:$0xff]
      %v866 = vld [vmem:[%s4 + $0x70] sm:$0xff]
      %v867 = vld [vmem:[%s4 + $0x78] sm:$0xff]
      %v868 = vld [vmem:[%s4 + $0x80] sm:$0xff]
      %v869 = vld [vmem:[%s4 + $0x88] sm:$0xff]
      %v870 = vld [vmem:[%s4 + $0x90] sm:$0xff]
      %v871 = vld [vmem:[%s4 + $0x98] sm:$0xff]
      %v872 = vld [vmem:[%s4 + $0xa0] sm:$0xff]
      %v873 = vld [vmem:[%s4 + $0xa8] sm:$0xff]
      %v874 = vld [vmem:[%s4 + $0xb0] sm:$0xff]
      %v875 = vld [vmem:[%s4 + $0xb8] sm:$0xff]
      %v876 = vld [vmem:[%s4 + $0xc0] sm:$0xff]
      %v877 = vld [vmem:[%s4 + $0xc8] sm:$0xff]
      %v878 = vld [vmem:[%s4 + $0xd0] sm:$0xff]
      %v879 = vld [vmem:[%s4 + $0xd8] sm:$0xff]
      %v880 = vld [vmem:[%s4 + $0xe0] sm:$0xff]
      %v881 = vld [vmem:[%s4 + $0xe8] sm:$0xff]
      %v882 = vld [vmem:[%s4 + $0xf0] sm:$0xff]
      %v883 = vld [vmem:[%s4 + $0xf8] sm:$0xff]
      %v884 = vld [vmem:[%s5] sm:$0x3]
      %v886 = vlaneseq
      %v887 = vshrl.u32 %v886, 7
      %v888 = vsub.s32 0, %v887
      %v889 = vrot.slane %v884, %v888
      %v890 = vlaneseq
      %v891 = vshrl.u32 %v890, 7
      %v892 = vsub.s32 1, %v891
      %v893 = vrot.slane %v884, %v892
      %v928 = vunpack.c.l.b16 %v852
      %v929 = vunpack.c.h.b16 %v852
      %v930 = vunpack.c.l.b16 %v853
      %v931 = vunpack.c.h.b16 %v853
      %v932 = vunpack.c.l.b16 %v854
      %v933 = vunpack.c.h.b16 %v854
      %v934 = vunpack.c.l.b16 %v855
      %v935 = vunpack.c.h.b16 %v855
      %v936 = vunpack.c.l.b16 %v856
      %v937 = vunpack.c.h.b16 %v856
      %v938 = vunpack.c.l.b16 %v857
      %v939 = vunpack.c.h.b16 %v857
      %v940 = vunpack.c.l.b16 %v858
      %v941 = vunpack.c.h.b16 %v858
      %v942 = vunpack.c.l.b16 %v859
      %v943 = vunpack.c.h.b16 %v859
      %v944 = vunpack.c.l.b16 %v860
      %v945 = vunpack.c.h.b16 %v860
      %v946 = vunpack.c.l.b16 %v861
      %v947 = vunpack.c.h.b16 %v861
      %v948 = vunpack.c.l.b16 %v862
      %v949 = vunpack.c.h.b16 %v862
      %v950 = vunpack.c.l.b16 %v863
      %v951 = vunpack.c.h.b16 %v863
      %v952 = vunpack.c.l.b16 %v864
      %v953 = vunpack.c.h.b16 %v864
      %v954 = vunpack.c.l.b16 %v865
      %v955 = vunpack.c.h.b16 %v865
      %v956 = vunpack.c.l.b16 %v866
      %v957 = vunpack.c.h.b16 %v866
      %v958 = vunpack.c.l.b16 %v867
      %v959 = vunpack.c.h.b16 %v867
      %v960 = vunpack.c.l.b16 %v868
      %v961 = vunpack.c.h.b16 %v868
      %v962 = vunpack.c.l.b16 %v869
      %v963 = vunpack.c.h.b16 %v869
      %v964 = vunpack.c.l.b16 %v870
      %v965 = vunpack.c.h.b16 %v870
      %v966 = vunpack.c.l.b16 %v871
      %v967 = vunpack.c.h.b16 %v871
      %v968 = vunpack.c.l.b16 %v872
      %v969 = vunpack.c.h.b16 %v872
      %v970 = vunpack.c.l.b16 %v873
      %v971 = vunpack.c.h.b16 %v873
      %v972 = vunpack.c.l.b16 %v874
      %v973 = vunpack.c.h.b16 %v874
      %v974 = vunpack.c.l.b16 %v875
      %v975 = vunpack.c.h.b16 %v875
      %v976 = vunpack.c.l.b16 %v876
      %v977 = vunpack.c.h.b16 %v876
      %v978 = vunpack.c.l.b16 %v877
      %v979 = vunpack.c.h.b16 %v877
      %v980 = vunpack.c.l.b16 %v878
      %v981 = vunpack.c.h.b16 %v878
      %v982 = vunpack.c.l.b16 %v879
      %v983 = vunpack.c.h.b16 %v879
      %v984 = vunpack.c.l.b16 %v880
      %v985 = vunpack.c.h.b16 %v880
      %v986 = vunpack.c.l.b16 %v881
      %v987 = vunpack.c.h.b16 %v881
      %v988 = vunpack.c.l.b16 %v882
      %v989 = vunpack.c.h.b16 %v882
      %v990 = vunpack.c.l.b16 %v883
      %v991 = vunpack.c.h.b16 %v883
      %v992 = vpack.c.b16 %v930, %v928
      %v993 = vpack.c.b16 %v931, %v929
      %v994 = vpack.c.b16 %v934, %v932
      %v995 = vpack.c.b16 %v935, %v933
      %v996 = vpack.c.b16 %v938, %v936
      %v997 = vpack.c.b16 %v939, %v937
      %v998 = vpack.c.b16 %v942, %v940
      %v999 = vpack.c.b16 %v943, %v941
      %v1000 = vpack.c.b16 %v946, %v944
      %v1001 = vpack.c.b16 %v947, %v945
      %v1002 = vpack.c.b16 %v950, %v948
      %v1003 = vpack.c.b16 %v951, %v949
      %v1004 = vpack.c.b16 %v954, %v952
      %v1005 = vpack.c.b16 %v955, %v953
      %v1006 = vpack.c.b16 %v958, %v956
      %v1007 = vpack.c.b16 %v959, %v957
      %v1008 = vpack.c.b16 %v962, %v960
      %v1009 = vpack.c.b16 %v963, %v961
      %v1010 = vpack.c.b16 %v966, %v964
      %v1011 = vpack.c.b16 %v967, %v965
      %v1012 = vpack.c.b16 %v970, %v968
      %v1013 = vpack.c.b16 %v971, %v969
      %v1014 = vpack.c.b16 %v974, %v972
      %v1015 = vpack.c.b16 %v975, %v973
      %v1016 = vpack.c.b16 %v978, %v976
      %v1017 = vpack.c.b16 %v979, %v977
      %v1018 = vpack.c.b16 %v982, %v980
      %v1019 = vpack.c.b16 %v983, %v981
      %v1020 = vpack.c.b16 %v986, %v984
      %v1021 = vpack.c.b16 %v987, %v985
      %v1022 = vpack.c.b16 %v990, %v988
      %v1023 = vpack.c.b16 %v991, %v989
      %1056 = vmatprep.subr.bf16.mxu0 %v1007
      %1057 = vmatpush1.bf16.msra.mxu0 %v1006
      %1058 = vmatprep.subr.bf16.mxu0 %v1005
      %1059 = vmatpush1.bf16.msra.mxu0 %v1004
      %1060 = vmatprep.subr.bf16.mxu0 %v1003
      %1061 = vmatpush1.bf16.msra.mxu0 %v1002
      %1062 = vmatprep.subr.bf16.mxu0 %v1001
      %1063 = vmatpush1.bf16.msra.mxu0 %v1000
      %1064 = vmatprep.subr.bf16.mxu0 %v999
      %1065 = vmatpush1.bf16.msra.mxu0 %v998
      %1066 = vmatprep.subr.bf16.mxu0 %v997
      %1067 = vmatpush1.bf16.msra.mxu0 %v996
      %1068 = vmatprep.subr.bf16.mxu0 %v995
      %1069 = vmatpush1.bf16.msra.mxu0 %v994
      %1070 = vmatprep.subr.bf16.mxu0 %v993
      %1071 = vmatpush1.bf16.msra.mxu0 %v992
      %1072 = vmatprep.subr.bf16.mxu0 %v1023
      %1073 = vmatpush2.bf16.msra.mxu0 %v1022
      %1074 = vmatprep.subr.bf16.mxu0 %v1021
      %1075 = vmatpush2.bf16.msra.mxu0 %v1020
      %1076 = vmatprep.subr.bf16.mxu0 %v1019
      %1077 = vmatpush2.bf16.msra.mxu0 %v1018
      %1078 = vmatprep.subr.bf16.mxu0 %v1017
      %1079 = vmatpush2.bf16.msra.mxu0 %v1016
      %1080 = vmatprep.subr.bf16.mxu0 %v1015
      %1081 = vmatpush2.bf16.msra.mxu0 %v1014
      %1082 = vmatprep.subr.bf16.mxu0 %v1013
      %1083 = vmatpush2.bf16.msra.mxu0 %v1012
      %1084 = vmatprep.subr.bf16.mxu0 %v1011
      %1085 = vmatpush2.bf16.msra.mxu0 %v1010
      %1086 = vmatprep.subr.bf16.mxu0 %v1009
      %1087 = vmatpush2.bf16.msra.mxu0 %v1008
      %1088 = vmatprep.mubr.bf16.mxu0 %v837
      %1089 = vmatmul.mubr.bf16.gmra.mxu0 %v836
      %v1090 = vpop.f32.mrf.mxu0
      %v1091 = vadd.f32 %v889, %v1090
      %v1092 = vpop.f32.mrf.mxu0
      %v1093 = vadd.f32 %v893, %v1092
      %v1094 = vpop.f32.mrf.mxu0
      %v1095 = vadd.f32 %v889, %v1094
      %v1096 = vpop.f32.mrf.mxu0
      %v1097 = vadd.f32 %v893, %v1096
      %1098 = vmatprep.mubr.bf16.mxu0 %v839
      %1099 = vmatmul.mubr.bf16.gmra.mxu0 %v838
      %v1100 = vpop.f32.mrf.mxu0
      %v1101 = vadd.f32 %v889, %v1100
      %v1102 = vpop.f32.mrf.mxu0
      %v1103 = vadd.f32 %v893, %v1102
      %v1104 = vpop.f32.mrf.mxu0
      %v1105 = vadd.f32 %v889, %v1104
      %v1106 = vpop.f32.mrf.mxu0
      %v1107 = vadd.f32 %v893, %v1106
      %1108 = vmatprep.mubr.bf16.mxu0 %v841
      %1109 = vmatmul.mubr.bf16.gmra.mxu0 %v840
      %v1110 = vpop.f32.mrf.mxu0
      %v1111 = vadd.f32 %v889, %v1110
      %v1112 = vpop.f32.mrf.mxu0
      %v1113 = vadd.f32 %v893, %v1112
      %v1114 = vpop.f32.mrf.mxu0
      %v1115 = vadd.f32 %v889, %v1114
      %v1116 = vpop.f32.mrf.mxu0
      %v1117 = vadd.f32 %v893, %v1116
      %1118 = vmatprep.mubr.bf16.mxu0 %v843
      %1119 = vmatmul.mubr.bf16.gmra.mxu0 %v842
      %v1120 = vpop.f32.mrf.mxu0
      %v1121 = vadd.f32 %v889, %v1120
      %v1122 = vpop.f32.mrf.mxu0
      %v1123 = vadd.f32 %v893, %v1122
      %v1124 = vpop.f32.mrf.mxu0
      %v1125 = vadd.f32 %v889, %v1124
      %v1126 = vpop.f32.mrf.mxu0
      %v1127 = vadd.f32 %v893, %v1126
      %1128 = vmatprep.mubr.bf16.mxu0 %v845
      %1129 = vmatmul.mubr.bf16.gmra.mxu0 %v844
      %v1130 = vpop.f32.mrf.mxu0
      %v1131 = vadd.f32 %v889, %v1130
      %v1132 = vpop.f32.mrf.mxu0
      %v1133 = vadd.f32 %v893, %v1132
      %v1134 = vpop.f32.mrf.mxu0
      %v1135 = vadd.f32 %v889, %v1134
      %v1136 = vpop.f32.mrf.mxu0
      %v1137 = vadd.f32 %v893, %v1136
      %1138 = vmatprep.mubr.bf16.mxu0 %v847
      %1139 = vmatmul.mubr.bf16.gmra.mxu0 %v846
      %v1140 = vpop.f32.mrf.mxu0
      %v1141 = vadd.f32 %v889, %v1140
      %v1142 = vpop.f32.mrf.mxu0
      %v1143 = vadd.f32 %v893, %v1142
      %v1144 = vpop.f32.mrf.mxu0
      %v1145 = vadd.f32 %v889, %v1144
      %v1146 = vpop.f32.mrf.mxu0
      %v1147 = vadd.f32 %v893, %v1146
      %1148 = vmatprep.mubr.bf16.mxu0 %v849
      %1149 = vmatmul.mubr.bf16.gmra.mxu0 %v848
      %v1150 = vpop.f32.mrf.mxu0
      %v1151 = vadd.f32 %v889, %v1150
      %v1152 = vpop.f32.mrf.mxu0
      %v1153 = vadd.f32 %v893, %v1152
      %v1154 = vpop.f32.mrf.mxu0
      %v1155 = vadd.f32 %v889, %v1154
      %v1156 = vpop.f32.mrf.mxu0
      %v1157 = vadd.f32 %v893, %v1156
      %1158 = vmatprep.mubr.bf16.mxu0 %v851
      %1159 = vmatmul.mubr.bf16.gmra.mxu0 %v850
      %v1160 = vpop.f32.mrf.mxu0
      %v1161 = vadd.f32 %v889, %v1160
      %v1162 = vpop.f32.mrf.mxu0
      %v1163 = vadd.f32 %v893, %v1162
      %v1164 = vpop.f32.mrf.mxu0
      %v1165 = vadd.f32 %v889, %v1164
      %v1166 = vpop.f32.mrf.mxu0
      %v1167 = vadd.f32 %v893, %v1166
      %1168 = vdwg.mxu0
      %v1169 = vmax.f32 %v1091, 0.0
      %v1170 = vmax.f32 %v1093, 0.0
      %v1171 = vmax.f32 %v1095, 0.0
      %v1172 = vmax.f32 %v1097, 0.0
      %v1173 = vmax.f32 %v1101, 0.0
      %v1174 = vmax.f32 %v1103, 0.0
      %v1175 = vmax.f32 %v1105, 0.0
      %v1176 = vmax.f32 %v1107, 0.0
      %v1177 = vmax.f32 %v1111, 0.0
      %v1178 = vmax.f32 %v1113, 0.0
      %v1179 = vmax.f32 %v1115, 0.0
      %v1180 = vmax.f32 %v1117, 0.0
      %v1181 = vmax.f32 %v1121, 0.0
      %v1182 = vmax.f32 %v1123, 0.0
      %v1183 = vmax.f32 %v1125, 0.0
      %v1184 = vmax.f32 %v1127, 0.0
      %v1185 = vmax.f32 %v1131, 0.0
      %v1186 = vmax.f32 %v1133, 0.0
      %v1187 = vmax.f32 %v1135, 0.0
      %v1188 = vmax.f32 %v1137, 0.0
      %v1189 = vmax.f32 %v1141, 0.0
      %v1190 = vmax.f32 %v1143, 0.0
      %v1191 = vmax.f32 %v1145, 0.0
      %v1192 = vmax.f32 %v1147, 0.0
      %v1193 = vmax.f32 %v1151, 0.0
      %v1194 = vmax.f32 %v1153, 0.0
      %v1195 = vmax.f32 %v1155, 0.0
      %v1196 = vmax.f32 %v1157, 0.0
      %v1197 = vmax.f32 %v1161, 0.0
      %v1198 = vmax.f32 %v1163, 0.0
      %v1199 = vmax.f32 %v1165, 0.0
      %v1200 = vmax.f32 %v1167, 0.0
      %v1201 = vpack.c.bf16 %v1171, %v1169
      %v1202 = vpack.c.bf16 %v1172, %v1170
      %v1203 = vpack.c.bf16 %v1175, %v1173
      %v1204 = vpack.c.bf16 %v1176, %v1174
      %v1205 = vpack.c.bf16 %v1179, %v1177
      %v1206 = vpack.c.bf16 %v1180, %v1178
      %v1207 = vpack.c.bf16 %v1183, %v1181
      %v1208 = vpack.c.bf16 %v1184, %v1182
      %v1209 = vpack.c.bf16 %v1187, %v1185
      %v1210 = vpack.c.bf16 %v1188, %v1186
      %v1211 = vpack.c.bf16 %v1191, %v1189
      %v1212 = vpack.c.bf16 %v1192, %v1190
      %v1213 = vpack.c.bf16 %v1195, %v1193
      %v1214 = vpack.c.bf16 %v1196, %v1194
      %v1215 = vpack.c.bf16 %v1199, %v1197
      %v1216 = vpack.c.bf16 %v1200, %v1198
      %v1217 = vld [vmem:[%s6] sm:$0xff]
      %v1218 = vld [vmem:[%s6 + $0x8] sm:$0xff]
      %v1219 = vld [vmem:[%s6 + $0x10] sm:$0xff]
      %v1220 = vld [vmem:[%s6 + $0x18] sm:$0xff]
      %v1221 = vld [vmem:[%s6 + $0x20] sm:$0xff]
      %v1222 = vld [vmem:[%s6 + $0x28] sm:$0xff]
      %v1223 = vld [vmem:[%s6 + $0x30] sm:$0xff]
      %v1224 = vld [vmem:[%s6 + $0x38] sm:$0xff]
      %v1225 = vld [vmem:[%s6 + $0x40] sm:$0xff]
      %v1226 = vld [vmem:[%s6 + $0x48] sm:$0xff]
      %v1227 = vld [vmem:[%s6 + $0x50] sm:$0xff]
      %v1228 = vld [vmem:[%s6 + $0x58] sm:$0xff]
      %v1229 = vld [vmem:[%s6 + $0x60] sm:$0xff]
      %v1230 = vld [vmem:[%s6 + $0x68] sm:$0xff]
      %v1231 = vld [vmem:[%s6 + $0x70] sm:$0xff]
      %v1232 = vld [vmem:[%s6 + $0x78] sm:$0xff]
      %v1233 = vld [vmem:[%s6 + $0x80] sm:$0xff]
      %v1234 = vld [vmem:[%s6 + $0x88] sm:$0xff]
      %v1235 = vld [vmem:[%s6 + $0x90] sm:$0xff]
      %v1236 = vld [vmem:[%s6 + $0x98] sm:$0xff]
      %v1237 = vld [vmem:[%s6 + $0xa0] sm:$0xff]
      %v1238 = vld [vmem:[%s6 + $0xa8] sm:$0xff]
      %v1239 = vld [vmem:[%s6 + $0xb0] sm:$0xff]
      %v1240 = vld [vmem:[%s6 + $0xb8] sm:$0xff]
      %v1241 = vld [vmem:[%s6 + $0xc0] sm:$0xff]
      %v1242 = vld [vmem:[%s6 + $0xc8] sm:$0xff]
      %v1243 = vld [vmem:[%s6 + $0xd0] sm:$0xff]
      %v1244 = vld [vmem:[%s6 + $0xd8] sm:$0xff]
      %v1245 = vld [vmem:[%s6 + $0xe0] sm:$0xff]
      %v1246 = vld [vmem:[%s6 + $0xe8] sm:$0xff]
      %v1247 = vld [vmem:[%s6 + $0xf0] sm:$0xff]
      %v1248 = vld [vmem:[%s6 + $0xf8] sm:$0xff]
      %v1249 = vld [vmem:[%s7] sm:$0x3]
      %v1251 = vlaneseq
      %v1252 = vshrl.u32 %v1251, 7
      %v1253 = vsub.s32 0, %v1252
      %v1254 = vrot.slane %v1249, %v1253
      %v1255 = vlaneseq
      %v1256 = vshrl.u32 %v1255, 7
      %v1257 = vsub.s32 1, %v1256
      %v1258 = vrot.slane %v1249, %v1257
      %v1293 = vunpack.c.l.b16 %v1217
      %v1294 = vunpack.c.h.b16 %v1217
      %v1295 = vunpack.c.l.b16 %v1218
      %v1296 = vunpack.c.h.b16 %v1218
      %v1297 = vunpack.c.l.b16 %v1219
      %v1298 = vunpack.c.h.b16 %v1219
      %v1299 = vunpack.c.l.b16 %v1220
      %v1300 = vunpack.c.h.b16 %v1220
      %v1301 = vunpack.c.l.b16 %v1221
      %v1302 = vunpack.c.h.b16 %v1221
      %v1303 = vunpack.c.l.b16 %v1222
      %v1304 = vunpack.c.h.b16 %v1222
      %v1305 = vunpack.c.l.b16 %v1223
      %v1306 = vunpack.c.h.b16 %v1223
      %v1307 = vunpack.c.l.b16 %v1224
      %v1308 = vunpack.c.h.b16 %v1224
      %v1309 = vunpack.c.l.b16 %v1225
      %v1310 = vunpack.c.h.b16 %v1225
      %v1311 = vunpack.c.l.b16 %v1226
      %v1312 = vunpack.c.h.b16 %v1226
      %v1313 = vunpack.c.l.b16 %v1227
      %v1314 = vunpack.c.h.b16 %v1227
      %v1315 = vunpack.c.l.b16 %v1228
      %v1316 = vunpack.c.h.b16 %v1228
      %v1317 = vunpack.c.l.b16 %v1229
      %v1318 = vunpack.c.h.b16 %v1229
      %v1319 = vunpack.c.l.b16 %v1230
      %v1320 = vunpack.c.h.b16 %v1230
      %v1321 = vunpack.c.l.b16 %v1231
      %v1322 = vunpack.c.h.b16 %v1231
      %v1323 = vunpack.c.l.b16 %v1232
      %v1324 = vunpack.c.h.b16 %v1232
      %v1325 = vunpack.c.l.b16 %v1233
      %v1326 = vunpack.c.h.b16 %v1233
      %v1327 = vunpack.c.l.b16 %v1234
      %v1328 = vunpack.c.h.b16 %v1234
      %v1329 = vunpack.c.l.b16 %v1235
      %v1330 = vunpack.c.h.b16 %v1235
      %v1331 = vunpack.c.l.b16 %v1236
      %v1332 = vunpack.c.h.b16 %v1236
      %v1333 = vunpack.c.l.b16 %v1237
      %v1334 = vunpack.c.h.b16 %v1237
      %v1335 = vunpack.c.l.b16 %v1238
      %v1336 = vunpack.c.h.b16 %v1238
      %v1337 = vunpack.c.l.b16 %v1239
      %v1338 = vunpack.c.h.b16 %v1239
      %v1339 = vunpack.c.l.b16 %v1240
      %v1340 = vunpack.c.h.b16 %v1240
      %v1341 = vunpack.c.l.b16 %v1241
      %v1342 = vunpack.c.h.b16 %v1241
      %v1343 = vunpack.c.l.b16 %v1242
      %v1344 = vunpack.c.h.b16 %v1242
      %v1345 = vunpack.c.l.b16 %v1243
      %v1346 = vunpack.c.h.b16 %v1243
      %v1347 = vunpack.c.l.b16 %v1244
      %v1348 = vunpack.c.h.b16 %v1244
      %v1349 = vunpack.c.l.b16 %v1245
      %v1350 = vunpack.c.h.b16 %v1245
      %v1351 = vunpack.c.l.b16 %v1246
      %v1352 = vunpack.c.h.b16 %v1246
      %v1353 = vunpack.c.l.b16 %v1247
      %v1354 = vunpack.c.h.b16 %v1247
      %v1355 = vunpack.c.l.b16 %v1248
      %v1356 = vunpack.c.h.b16 %v1248
      %v1357 = vpack.c.b16 %v1295, %v1293
      %v1358 = vpack.c.b16 %v1296, %v1294
      %v1359 = vpack.c.b16 %v1299, %v1297
      %v1360 = vpack.c.b16 %v1300, %v1298
      %v1361 = vpack.c.b16 %v1303, %v1301
      %v1362 = vpack.c.b16 %v1304, %v1302
      %v1363 = vpack.c.b16 %v1307, %v1305
      %v1364 = vpack.c.b16 %v1308, %v1306
      %v1365 = vpack.c.b16 %v1311, %v1309
      %v1366 = vpack.c.b16 %v1312, %v1310
      %v1367 = vpack.c.b16 %v1315, %v1313
      %v1368 = vpack.c.b16 %v1316, %v1314
      %v1369 = vpack.c.b16 %v1319, %v1317
      %v1370 = vpack.c.b16 %v1320, %v1318
      %v1371 = vpack.c.b16 %v1323, %v1321
      %v1372 = vpack.c.b16 %v1324, %v1322
      %v1373 = vpack.c.b16 %v1327, %v1325
      %v1374 = vpack.c.b16 %v1328, %v1326
      %v1375 = vpack.c.b16 %v1331, %v1329
      %v1376 = vpack.c.b16 %v1332, %v1330
      %v1377 = vpack.c.b16 %v1335, %v1333
      %v1378 = vpack.c.b16 %v1336, %v1334
      %v1379 = vpack.c.b16 %v1339, %v1337
      %v1380 = vpack.c.b16 %v1340, %v1338
      %v1381 = vpack.c.b16 %v1343, %v1341
      %v1382 = vpack.c.b16 %v1344, %v1342
      %v1383 = vpack.c.b16 %v1347, %v1345
      %v1384 = vpack.c.b16 %v1348, %v1346
      %v1385 = vpack.c.b16 %v1351, %v1349
      %v1386 = vpack.c.b16 %v1352, %v1350
      %v1387 = vpack.c.b16 %v1355, %v1353
      %v1388 = vpack.c.b16 %v1356, %v1354
      %1421 = vmatprep.subr.bf16.mxu0 %v1372
      %1422 = vmatpush1.bf16.msra.mxu0 %v1371
      %1423 = vmatprep.subr.bf16.mxu0 %v1370
      %1424 = vmatpush1.bf16.msra.mxu0 %v1369
      %1425 = vmatprep.subr.bf16.mxu0 %v1368
      %1426 = vmatpush1.bf16.msra.mxu0 %v1367
      %1427 = vmatprep.subr.bf16.mxu0 %v1366
      %1428 = vmatpush1.bf16.msra.mxu0 %v1365
      %1429 = vmatprep.subr.bf16.mxu0 %v1364
      %1430 = vmatpush1.bf16.msra.mxu0 %v1363
      %1431 = vmatprep.subr.bf16.mxu0 %v1362
      %1432 = vmatpush1.bf16.msra.mxu0 %v1361
      %1433 = vmatprep.subr.bf16.mxu0 %v1360
      %1434 = vmatpush1.bf16.msra.mxu0 %v1359
      %1435 = vmatprep.subr.bf16.mxu0 %v1358
      %1436 = vmatpush1.bf16.msra.mxu0 %v1357
      %1437 = vmatprep.subr.bf16.mxu0 %v1388
      %1438 = vmatpush2.bf16.msra.mxu0 %v1387
      %1439 = vmatprep.subr.bf16.mxu0 %v1386
      %1440 = vmatpush2.bf16.msra.mxu0 %v1385
      %1441 = vmatprep.subr.bf16.mxu0 %v1384
      %1442 = vmatpush2.bf16.msra.mxu0 %v1383
      %1443 = vmatprep.subr.bf16.mxu0 %v1382
      %1444 = vmatpush2.bf16.msra.mxu0 %v1381
      %1445 = vmatprep.subr.bf16.mxu0 %v1380
      %1446 = vmatpush2.bf16.msra.mxu0 %v1379
      %1447 = vmatprep.subr.bf16.mxu0 %v1378
      %1448 = vmatpush2.bf16.msra.mxu0 %v1377
      %1449 = vmatprep.subr.bf16.mxu0 %v1376
      %1450 = vmatpush2.bf16.msra.mxu0 %v1375
      %1451 = vmatprep.subr.bf16.mxu0 %v1374
      %1452 = vmatpush2.bf16.msra.mxu0 %v1373
      %1453 = vmatprep.mubr.bf16.mxu0 %v1202
      %1454 = vmatmul.mubr.bf16.gmra.mxu0 %v1201
      %v1455 = vpop.f32.mrf.mxu0
      %v1456 = vadd.f32 %v1254, %v1455
      %v1457 = vpop.f32.mrf.mxu0
      %v1458 = vadd.f32 %v1258, %v1457
      %v1459 = vpop.f32.mrf.mxu0
      %v1460 = vadd.f32 %v1254, %v1459
      %v1461 = vpop.f32.mrf.mxu0
      %v1462 = vadd.f32 %v1258, %v1461
      %1463 = vmatprep.mubr.bf16.mxu0 %v1204
      %1464 = vmatmul.mubr.bf16.gmra.mxu0 %v1203
      %v1465 = vpop.f32.mrf.mxu0
      %v1466 = vadd.f32 %v1254, %v1465
      %v1467 = vpop.f32.mrf.mxu0
      %v1468 = vadd.f32 %v1258, %v1467
      %v1469 = vpop.f32.mrf.mxu0
      %v1470 = vadd.f32 %v1254, %v1469
      %v1471 = vpop.f32.mrf.mxu0
      %v1472 = vadd.f32 %v1258, %v1471
      %1473 = vmatprep.mubr.bf16.mxu0 %v1206
      %1474 = vmatmul.mubr.bf16.gmra.mxu0 %v1205
      %v1475 = vpop.f32.mrf.mxu0
      %v1476 = vadd.f32 %v1254, %v1475
      %v1477 = vpop.f32.mrf.mxu0
      %v1478 = vadd.f32 %v1258, %v1477
      %v1479 = vpop.f32.mrf.mxu0
      %v1480 = vadd.f32 %v1254, %v1479
      %v1481 = vpop.f32.mrf.mxu0
      %v1482 = vadd.f32 %v1258, %v1481
      %1483 = vmatprep.mubr.bf16.mxu0 %v1208
      %1484 = vmatmul.mubr.bf16.gmra.mxu0 %v1207
      %v1485 = vpop.f32.mrf.mxu0
      %v1486 = vadd.f32 %v1254, %v1485
      %v1487 = vpop.f32.mrf.mxu0
      %v1488 = vadd.f32 %v1258, %v1487
      %v1489 = vpop.f32.mrf.mxu0
      %v1490 = vadd.f32 %v1254, %v1489
      %v1491 = vpop.f32.mrf.mxu0
      %v1492 = vadd.f32 %v1258, %v1491
      %1493 = vmatprep.mubr.bf16.mxu0 %v1210
      %1494 = vmatmul.mubr.bf16.gmra.mxu0 %v1209
      %v1495 = vpop.f32.mrf.mxu0
      %v1496 = vadd.f32 %v1254, %v1495
      %v1497 = vpop.f32.mrf.mxu0
      %v1498 = vadd.f32 %v1258, %v1497
      %v1499 = vpop.f32.mrf.mxu0
      %v1500 = vadd.f32 %v1254, %v1499
      %v1501 = vpop.f32.mrf.mxu0
      %v1502 = vadd.f32 %v1258, %v1501
      %1503 = vmatprep.mubr.bf16.mxu0 %v1212
      %1504 = vmatmul.mubr.bf16.gmra.mxu0 %v1211
      %v1505 = vpop.f32.mrf.mxu0
      %v1506 = vadd.f32 %v1254, %v1505
      %v1507 = vpop.f32.mrf.mxu0
      %v1508 = vadd.f32 %v1258, %v1507
      %v1509 = vpop.f32.mrf.mxu0
      %v1510 = vadd.f32 %v1254, %v1509
      %v1511 = vpop.f32.mrf.mxu0
      %v1512 = vadd.f32 %v1258, %v1511
      %1513 = vmatprep.mubr.bf16.mxu0 %v1214
      %1514 = vmatmul.mubr.bf16.gmra.mxu0 %v1213
      %v1515 = vpop.f32.mrf.mxu0
      %v1516 = vadd.f32 %v1254, %v1515
      %v1517 = vpop.f32.mrf.mxu0
      %v1518 = vadd.f32 %v1258, %v1517
      %v1519 = vpop.f32.mrf.mxu0
      %v1520 = vadd.f32 %v1254, %v1519
      %v1521 = vpop.f32.mrf.mxu0
      %v1522 = vadd.f32 %v1258, %v1521
      %1523 = vmatprep.mubr.bf16.mxu0 %v1216
      %1524 = vmatmul.mubr.bf16.gmra.mxu0 %v1215
      %v1525 = vpop.f32.mrf.mxu0
      %v1526 = vadd.f32 %v1254, %v1525
      %v1527 = vpop.f32.mrf.mxu0
      %v1528 = vadd.f32 %v1258, %v1527
      %v1529 = vpop.f32.mrf.mxu0
      %v1530 = vadd.f32 %v1254, %v1529
      %v1531 = vpop.f32.mrf.mxu0
      %v1532 = vadd.f32 %v1258, %v1531
      %1533 = vdwg.mxu0
      %v1534 = vmax.f32 %v1456, 0.0
      %v1535 = vmax.f32 %v1458, 0.0
      %v1536 = vmax.f32 %v1460, 0.0
      %v1537 = vmax.f32 %v1462, 0.0
      %v1538 = vmax.f32 %v1466, 0.0
      %v1539 = vmax.f32 %v1468, 0.0
      %v1540 = vmax.f32 %v1470, 0.0
      %v1541 = vmax.f32 %v1472, 0.0
      %v1542 = vmax.f32 %v1476, 0.0
      %v1543 = vmax.f32 %v1478, 0.0
      %v1544 = vmax.f32 %v1480, 0.0
      %v1545 = vmax.f32 %v1482, 0.0
      %v1546 = vmax.f32 %v1486, 0.0
      %v1547 = vmax.f32 %v1488, 0.0
      %v1548 = vmax.f32 %v1490, 0.0
      %v1549 = vmax.f32 %v1492, 0.0
      %v1550 = vmax.f32 %v1496, 0.0
      %v1551 = vmax.f32 %v1498, 0.0
      %v1552 = vmax.f32 %v1500, 0.0
      %v1553 = vmax.f32 %v1502, 0.0
      %v1554 = vmax.f32 %v1506, 0.0
      %v1555 = vmax.f32 %v1508, 0.0
      %v1556 = vmax.f32 %v1510, 0.0
      %v1557 = vmax.f32 %v1512, 0.0
      %v1558 = vmax.f32 %v1516, 0.0
      %v1559 = vmax.f32 %v1518, 0.0
      %v1560 = vmax.f32 %v1520, 0.0
      %v1561 = vmax.f32 %v1522, 0.0
      %v1562 = vmax.f32 %v1526, 0.0
      %v1563 = vmax.f32 %v1528, 0.0
      %v1564 = vmax.f32 %v1530, 0.0
      %v1565 = vmax.f32 %v1532, 0.0
      %v1566 = vld [vmem:[%s9] sm:$0x3]
      %v1568 = vlaneseq
      %v1569 = vshrl.u32 %v1568, 7
      %v1570 = vsub.s32 0, %v1569
      %v1571 = vrot.slane %v1566, %v1570
      %v1572 = vlaneseq
      %v1573 = vshrl.u32 %v1572, 7
      %v1574 = vsub.s32 1, %v1573
      %v1575 = vrot.slane %v1566, %v1574
      %v1578 = vmul.f32 %v1534, %v1571
      %v1579 = vmul.f32 %v1535, %v1575
      %v1580 = vmul.f32 %v1536, %v1571
      %v1581 = vmul.f32 %v1537, %v1575
      %v1582 = vmul.f32 %v1538, %v1571
      %v1583 = vmul.f32 %v1539, %v1575
      %v1584 = vmul.f32 %v1540, %v1571
      %v1585 = vmul.f32 %v1541, %v1575
      %v1586 = vmul.f32 %v1542, %v1571
      %v1587 = vmul.f32 %v1543, %v1575
      %v1588 = vmul.f32 %v1544, %v1571
      %v1589 = vmul.f32 %v1545, %v1575
      %v1590 = vmul.f32 %v1546, %v1571
      %v1591 = vmul.f32 %v1547, %v1575
      %v1592 = vmul.f32 %v1548, %v1571
      %v1593 = vmul.f32 %v1549, %v1575
      %v1594 = vmul.f32 %v1550, %v1571
      %v1595 = vmul.f32 %v1551, %v1575
      %v1596 = vmul.f32 %v1552, %v1571
      %v1597 = vmul.f32 %v1553, %v1575
      %v1598 = vmul.f32 %v1554, %v1571
      %v1599 = vmul.f32 %v1555, %v1575
      %v1600 = vmul.f32 %v1556, %v1571
      %v1601 = vmul.f32 %v1557, %v1575
      %v1602 = vmul.f32 %v1558, %v1571
      %v1603 = vmul.f32 %v1559, %v1575
      %v1604 = vmul.f32 %v1560, %v1571
      %v1605 = vmul.f32 %v1561, %v1575
      %v1606 = vmul.f32 %v1562, %v1571
      %v1607 = vmul.f32 %v1563, %v1575
      %v1608 = vmul.f32 %v1564, %v1571
      %v1609 = vmul.f32 %v1565, %v1575
      %v1610 = vld [vmem:[%s1] sm:$0xff]
      %v1611 = vld [vmem:[%s1 + $0x8] sm:$0xff]
      %v1612 = vld [vmem:[%s1 + $0x10] sm:$0xff]
      %v1613 = vld [vmem:[%s1 + $0x18] sm:$0xff]
      %v1614 = vld [vmem:[%s1 + $0x20] sm:$0xff]
      %v1615 = vld [vmem:[%s1 + $0x28] sm:$0xff]
      %v1616 = vld [vmem:[%s1 + $0x30] sm:$0xff]
      %v1617 = vld [vmem:[%s1 + $0x38] sm:$0xff]
      %v1618 = vld [vmem:[%s1 + $0x40] sm:$0xff]
      %v1619 = vld [vmem:[%s1 + $0x48] sm:$0xff]
      %v1620 = vld [vmem:[%s1 + $0x50] sm:$0xff]
      %v1621 = vld [vmem:[%s1 + $0x58] sm:$0xff]
      %v1622 = vld [vmem:[%s1 + $0x60] sm:$0xff]
      %v1623 = vld [vmem:[%s1 + $0x68] sm:$0xff]
      %v1624 = vld [vmem:[%s1 + $0x70] sm:$0xff]
      %v1625 = vld [vmem:[%s1 + $0x78] sm:$0xff]
      %v1626 = vld [vmem:[%s1 + $0x80] sm:$0xff]
      %v1627 = vld [vmem:[%s1 + $0x88] sm:$0xff]
      %v1628 = vld [vmem:[%s1 + $0x90] sm:$0xff]
      %v1629 = vld [vmem:[%s1 + $0x98] sm:$0xff]
      %v1630 = vld [vmem:[%s1 + $0xa0] sm:$0xff]
      %v1631 = vld [vmem:[%s1 + $0xa8] sm:$0xff]
      %v1632 = vld [vmem:[%s1 + $0xb0] sm:$0xff]
      %v1633 = vld [vmem:[%s1 + $0xb8] sm:$0xff]
      %v1634 = vld [vmem:[%s1 + $0xc0] sm:$0xff]
      %v1635 = vld [vmem:[%s1 + $0xc8] sm:$0xff]
      %v1636 = vld [vmem:[%s1 + $0xd0] sm:$0xff]
      %v1637 = vld [vmem:[%s1 + $0xd8] sm:$0xff]
      %v1638 = vld [vmem:[%s1 + $0xe0] sm:$0xff]
      %v1639 = vld [vmem:[%s1 + $0xe8] sm:$0xff]
      %v1640 = vld [vmem:[%s1 + $0xf0] sm:$0xff]
      %v1641 = vld [vmem:[%s1 + $0xf8] sm:$0xff]
      %v1674 = vunpack.c.l.b16 %v1610
      %v1675 = vunpack.c.h.b16 %v1610
      %v1676 = vunpack.c.l.b16 %v1611
      %v1677 = vunpack.c.h.b16 %v1611
      %v1678 = vunpack.c.l.b16 %v1612
      %v1679 = vunpack.c.h.b16 %v1612
      %v1680 = vunpack.c.l.b16 %v1613
      %v1681 = vunpack.c.h.b16 %v1613
      %v1682 = vunpack.c.l.b16 %v1614
      %v1683 = vunpack.c.h.b16 %v1614
      %v1684 = vunpack.c.l.b16 %v1615
      %v1685 = vunpack.c.h.b16 %v1615
      %v1686 = vunpack.c.l.b16 %v1616
      %v1687 = vunpack.c.h.b16 %v1616
      %v1688 = vunpack.c.l.b16 %v1617
      %v1689 = vunpack.c.h.b16 %v1617
      %v1690 = vunpack.c.l.b16 %v1618
      %v1691 = vunpack.c.h.b16 %v1618
      %v1692 = vunpack.c.l.b16 %v1619
      %v1693 = vunpack.c.h.b16 %v1619
      %v1694 = vunpack.c.l.b16 %v1620
      %v1695 = vunpack.c.h.b16 %v1620
      %v1696 = vunpack.c.l.b16 %v1621
      %v1697 = vunpack.c.h.b16 %v1621
      %v1698 = vunpack.c.l.b16 %v1622
      %v1699 = vunpack.c.h.b16 %v1622
      %v1700 = vunpack.c.l.b16 %v1623
      %v1701 = vunpack.c.h.b16 %v1623
      %v1702 = vunpack.c.l.b16 %v1624
      %v1703 = vunpack.c.h.b16 %v1624
      %v1704 = vunpack.c.l.b16 %v1625
      %v1705 = vunpack.c.h.b16 %v1625
      %v1706 = vunpack.c.l.b16 %v1626
      %v1707 = vunpack.c.h.b16 %v1626
      %v1708 = vunpack.c.l.b16 %v1627
      %v1709 = vunpack.c.h.b16 %v1627
      %v1710 = vunpack.c.l.b16 %v1628
      %v1711 = vunpack.c.h.b16 %v1628
      %v1712 = vunpack.c.l.b16 %v1629
      %v1713 = vunpack.c.h.b16 %v1629
      %v1714 = vunpack.c.l.b16 %v1630
      %v1715 = vunpack.c.h.b16 %v1630
      %v1716 = vunpack.c.l.b16 %v1631
      %v1717 = vunpack.c.h.b16 %v1631
      %v1718 = vunpack.c.l.b16 %v1632
      %v1719 = vunpack.c.h.b16 %v1632
      %v1720 = vunpack.c.l.b16 %v1633
      %v1721 = vunpack.c.h.b16 %v1633
      %v1722 = vunpack.c.l.b16 %v1634
      %v1723 = vunpack.c.h.b16 %v1634
      %v1724 = vunpack.c.l.b16 %v1635
      %v1725 = vunpack.c.h.b16 %v1635
      %v1726 = vunpack.c.l.b16 %v1636
      %v1727 = vunpack.c.h.b16 %v1636
      %v1728 = vunpack.c.l.b16 %v1637
      %v1729 = vunpack.c.h.b16 %v1637
      %v1730 = vunpack.c.l.b16 %v1638
      %v1731 = vunpack.c.h.b16 %v1638
      %v1732 = vunpack.c.l.b16 %v1639
      %v1733 = vunpack.c.h.b16 %v1639
      %v1734 = vunpack.c.l.b16 %v1640
      %v1735 = vunpack.c.h.b16 %v1640
      %v1736 = vunpack.c.l.b16 %v1641
      %v1737 = vunpack.c.h.b16 %v1641
      %v1738 = vpack.c.b16 %v1676, %v1674
      %v1739 = vpack.c.b16 %v1677, %v1675
      %v1740 = vpack.c.b16 %v1680, %v1678
      %v1741 = vpack.c.b16 %v1681, %v1679
      %v1742 = vpack.c.b16 %v1684, %v1682
      %v1743 = vpack.c.b16 %v1685, %v1683
      %v1744 = vpack.c.b16 %v1688, %v1686
      %v1745 = vpack.c.b16 %v1689, %v1687
      %v1746 = vpack.c.b16 %v1692, %v1690
      %v1747 = vpack.c.b16 %v1693, %v1691
      %v1748 = vpack.c.b16 %v1696, %v1694
      %v1749 = vpack.c.b16 %v1697, %v1695
      %v1750 = vpack.c.b16 %v1700, %v1698
      %v1751 = vpack.c.b16 %v1701, %v1699
      %v1752 = vpack.c.b16 %v1704, %v1702
      %v1753 = vpack.c.b16 %v1705, %v1703
      %v1754 = vpack.c.b16 %v1708, %v1706
      %v1755 = vpack.c.b16 %v1709, %v1707
      %v1756 = vpack.c.b16 %v1712, %v1710
      %v1757 = vpack.c.b16 %v1713, %v1711
      %v1758 = vpack.c.b16 %v1716, %v1714
      %v1759 = vpack.c.b16 %v1717, %v1715
      %v1760 = vpack.c.b16 %v1720, %v1718
      %v1761 = vpack.c.b16 %v1721, %v1719
      %v1762 = vpack.c.b16 %v1724, %v1722
      %v1763 = vpack.c.b16 %v1725, %v1723
      %v1764 = vpack.c.b16 %v1728, %v1726
      %v1765 = vpack.c.b16 %v1729, %v1727
      %v1766 = vpack.c.b16 %v1732, %v1730
      %v1767 = vpack.c.b16 %v1733, %v1731
      %v1768 = vpack.c.b16 %v1736, %v1734
      %v1769 = vpack.c.b16 %v1737, %v1735
      %1802 = vmatprep.subr.bf16.mxu0 %v1753
      %1803 = vmatpush1.bf16.msra.mxu0 %v1752
      %1804 = vmatprep.subr.bf16.mxu0 %v1751
      %1805 = vmatpush1.bf16.msra.mxu0 %v1750
      %1806 = vmatprep.subr.bf16.mxu0 %v1749
      %1807 = vmatpush1.bf16.msra.mxu0 %v1748
      %1808 = vmatprep.subr.bf16.mxu0 %v1747
      %1809 = vmatpush1.bf16.msra.mxu0 %v1746
      %1810 = vmatprep.subr.bf16.mxu0 %v1745
      %1811 = vmatpush1.bf16.msra.mxu0 %v1744
      %1812 = vmatprep.subr.bf16.mxu0 %v1743
      %1813 = vmatpush1.bf16.msra.mxu0 %v1742
      %1814 = vmatprep.subr.bf16.mxu0 %v1741
      %1815 = vmatpush1.bf16.msra.mxu0 %v1740
      %1816 = vmatprep.subr.bf16.mxu0 %v1739
      %1817 = vmatpush1.bf16.msra.mxu0 %v1738
      %1818 = vmatprep.subr.bf16.mxu0 %v1769
      %1819 = vmatpush2.bf16.msra.mxu0 %v1768
      %1820 = vmatprep.subr.bf16.mxu0 %v1767
      %1821 = vmatpush2.bf16.msra.mxu0 %v1766
      %1822 = vmatprep.subr.bf16.mxu0 %v1765
      %1823 = vmatpush2.bf16.msra.mxu0 %v1764
      %1824 = vmatprep.subr.bf16.mxu0 %v1763
      %1825 = vmatpush2.bf16.msra.mxu0 %v1762
      %1826 = vmatprep.subr.bf16.mxu0 %v1761
      %1827 = vmatpush2.bf16.msra.mxu0 %v1760
      %1828 = vmatprep.subr.bf16.mxu0 %v1759
      %1829 = vmatpush2.bf16.msra.mxu0 %v1758
      %1830 = vmatprep.subr.bf16.mxu0 %v1757
      %1831 = vmatpush2.bf16.msra.mxu0 %v1756
      %1832 = vmatprep.subr.bf16.mxu0 %v1755
      %1833 = vmatpush2.bf16.msra.mxu0 %v1754
      %1834 = vmatprep.mubr.bf16.mxu0 %v500
      %1835 = vmatmul.mubr.bf16.gmra.mxu0 %v499
      %v1836 = vpop.f32.mrf.mxu0
      %v1837 = vadd.f32 0.0, %v1836
      %v1838 = vpop.f32.mrf.mxu0
      %v1839 = vadd.f32 0.0, %v1838
      %v1840 = vpop.f32.mrf.mxu0
      %v1841 = vadd.f32 0.0, %v1840
      %v1842 = vpop.f32.mrf.mxu0
      %v1843 = vadd.f32 0.0, %v1842
      %1844 = vmatprep.mubr.bf16.mxu0 %v502
      %1845 = vmatmul.mubr.bf16.gmra.mxu0 %v501
      %v1846 = vpop.f32.mrf.mxu0
      %v1847 = vadd.f32 0.0, %v1846
      %v1848 = vpop.f32.mrf.mxu0
      %v1849 = vadd.f32 0.0, %v1848
      %v1850 = vpop.f32.mrf.mxu0
      %v1851 = vadd.f32 0.0, %v1850
      %v1852 = vpop.f32.mrf.mxu0
      %v1853 = vadd.f32 0.0, %v1852
      %1854 = vmatprep.mubr.bf16.mxu0 %v504
      %1855 = vmatmul.mubr.bf16.gmra.mxu0 %v503
      %v1856 = vpop.f32.mrf.mxu0
      %v1857 = vadd.f32 0.0, %v1856
      %v1858 = vpop.f32.mrf.mxu0
      %v1859 = vadd.f32 0.0, %v1858
      %v1860 = vpop.f32.mrf.mxu0
      %v1861 = vadd.f32 0.0, %v1860
      %v1862 = vpop.f32.mrf.mxu0
      %v1863 = vadd.f32 0.0, %v1862
      %1864 = vmatprep.mubr.bf16.mxu0 %v506
      %1865 = vmatmul.mubr.bf16.gmra.mxu0 %v505
      %v1866 = vpop.f32.mrf.mxu0
      %v1867 = vadd.f32 0.0, %v1866
      %v1868 = vpop.f32.mrf.mxu0
      %v1869 = vadd.f32 0.0, %v1868
      %v1870 = vpop.f32.mrf.mxu0
      %v1871 = vadd.f32 0.0, %v1870
      %v1872 = vpop.f32.mrf.mxu0
      %v1873 = vadd.f32 0.0, %v1872
      %1874 = vmatprep.mubr.bf16.mxu0 %v508
      %1875 = vmatmul.mubr.bf16.gmra.mxu0 %v507
      %v1876 = vpop.f32.mrf.mxu0
      %v1877 = vadd.f32 0.0, %v1876
      %v1878 = vpop.f32.mrf.mxu0
      %v1879 = vadd.f32 0.0, %v1878
      %v1880 = vpop.f32.mrf.mxu0
      %v1881 = vadd.f32 0.0, %v1880
      %v1882 = vpop.f32.mrf.mxu0
      %v1883 = vadd.f32 0.0, %v1882
      %1884 = vmatprep.mubr.bf16.mxu0 %v510
      %1885 = vmatmul.mubr.bf16.gmra.mxu0 %v509
      %v1886 = vpop.f32.mrf.mxu0
      %v1887 = vadd.f32 0.0, %v1886
      %v1888 = vpop.f32.mrf.mxu0
      %v1889 = vadd.f32 0.0, %v1888
      %v1890 = vpop.f32.mrf.mxu0
      %v1891 = vadd.f32 0.0, %v1890
      %v1892 = vpop.f32.mrf.mxu0
      %v1893 = vadd.f32 0.0, %v1892
      %1894 = vmatprep.mubr.bf16.mxu0 %v512
      %1895 = vmatmul.mubr.bf16.gmra.mxu0 %v511
      %v1896 = vpop.f32.mrf.mxu0
      %v1897 = vadd.f32 0.0, %v1896
      %v1898 = vpop.f32.mrf.mxu0
      %v1899 = vadd.f32 0.0, %v1898
      %v1900 = vpop.f32.mrf.mxu0
      %v1901 = vadd.f32 0.0, %v1900
      %v1902 = vpop.f32.mrf.mxu0
      %v1903 = vadd.f32 0.0, %v1902
      %1904 = vmatprep.mubr.bf16.mxu0 %v514
      %1905 = vmatmul.mubr.bf16.gmra.mxu0 %v513
      %v1906 = vpop.f32.mrf.mxu0
      %v1907 = vadd.f32 0.0, %v1906
      %v1908 = vpop.f32.mrf.mxu0
      %v1909 = vadd.f32 0.0, %v1908
      %v1910 = vpop.f32.mrf.mxu0
      %v1911 = vadd.f32 0.0, %v1910
      %v1912 = vpop.f32.mrf.mxu0
      %v1913 = vadd.f32 0.0, %v1912
      %1914 = vdwg.mxu0
      %v1915 = vunpack.c.l.bf16 %v391
      %v1916 = vunpack.c.h.bf16 %v391
      %v1917 = vunpack.c.l.bf16 %v392
      %v1918 = vunpack.c.h.bf16 %v392
      %v1919 = vunpack.c.l.bf16 %v393
      %v1920 = vunpack.c.h.bf16 %v393
      %v1921 = vunpack.c.l.bf16 %v394
      %v1922 = vunpack.c.h.bf16 %v394
      %v1923 = vunpack.c.l.bf16 %v395
      %v1924 = vunpack.c.h.bf16 %v395
      %v1925 = vunpack.c.l.bf16 %v396
      %v1926 = vunpack.c.h.bf16 %v396
      %v1927 = vunpack.c.l.bf16 %v397
      %v1928 = vunpack.c.h.bf16 %v397
      %v1929 = vunpack.c.l.bf16 %v398
      %v1930 = vunpack.c.h.bf16 %v398
      %v1931 = vunpack.c.l.bf16 %v399
      %v1932 = vunpack.c.h.bf16 %v399
      %v1933 = vunpack.c.l.bf16 %v400
      %v1934 = vunpack.c.h.bf16 %v400
      %v1935 = vunpack.c.l.bf16 %v401
      %v1936 = vunpack.c.h.bf16 %v401
      %v1937 = vunpack.c.l.bf16 %v402
      %v1938 = vunpack.c.h.bf16 %v402
      %v1939 = vunpack.c.l.bf16 %v403
      %v1940 = vunpack.c.h.bf16 %v403
      %v1941 = vunpack.c.l.bf16 %v404
      %v1942 = vunpack.c.h.bf16 %v404
      %v1943 = vunpack.c.l.bf16 %v405
      %v1944 = vunpack.c.h.bf16 %v405
      %v1945 = vunpack.c.l.bf16 %v406
      %v1946 = vunpack.c.h.bf16 %v406
      %v1947 = vmul.f32 %v1837, %v1915
      %v1948 = vmul.f32 %v1839, %v1916
      %v1949 = vmul.f32 %v1841, %v1917
      %v1950 = vmul.f32 %v1843, %v1918
      %v1951 = vmul.f32 %v1847, %v1919
      %v1952 = vmul.f32 %v1849, %v1920
      %v1953 = vmul.f32 %v1851, %v1921
      %v1954 = vmul.f32 %v1853, %v1922
      %v1955 = vmul.f32 %v1857, %v1923
      %v1956 = vmul.f32 %v1859, %v1924
      %v1957 = vmul.f32 %v1861, %v1925
      %v1958 = vmul.f32 %v1863, %v1926
      %v1959 = vmul.f32 %v1867, %v1927
      %v1960 = vmul.f32 %v1869, %v1928
      %v1961 = vmul.f32 %v1871, %v1929
      %v1962 = vmul.f32 %v1873, %v1930
      %v1963 = vmul.f32 %v1877, %v1931
      %v1964 = vmul.f32 %v1879, %v1932
      %v1965 = vmul.f32 %v1881, %v1933
      %v1966 = vmul.f32 %v1883, %v1934
      %v1967 = vmul.f32 %v1887, %v1935
      %v1968 = vmul.f32 %v1889, %v1936
      %v1969 = vmul.f32 %v1891, %v1937
      %v1970 = vmul.f32 %v1893, %v1938
      %v1971 = vmul.f32 %v1897, %v1939
      %v1972 = vmul.f32 %v1899, %v1940
      %v1973 = vmul.f32 %v1901, %v1941
      %v1974 = vmul.f32 %v1903, %v1942
      %v1975 = vmul.f32 %v1907, %v1943
      %v1976 = vmul.f32 %v1909, %v1944
      %v1977 = vmul.f32 %v1911, %v1945
      %v1978 = vmul.f32 %v1913, %v1946
      %v1979 = vld [vmem:[%s8] sm:$0x3]
      %v1981 = vlaneseq
      %v1982 = vshrl.u32 %v1981, 7
      %v1983 = vsub.s32 0, %v1982
      %v1984 = vrot.slane %v1979, %v1983
      %v1985 = vlaneseq
      %v1986 = vshrl.u32 %v1985, 7
      %v1987 = vsub.s32 1, %v1986
      %v1988 = vrot.slane %v1979, %v1987
      %v1991 = vmul.f32 %v1947, %v1984
      %v1992 = vmul.f32 %v1948, %v1988
      %v1993 = vmul.f32 %v1949, %v1984
      %v1994 = vmul.f32 %v1950, %v1988
      %v1995 = vmul.f32 %v1951, %v1984
      %v1996 = vmul.f32 %v1952, %v1988
      %v1997 = vmul.f32 %v1953, %v1984
      %v1998 = vmul.f32 %v1954, %v1988
      %v1999 = vmul.f32 %v1955, %v1984
      %v2000 = vmul.f32 %v1956, %v1988
      %v2001 = vmul.f32 %v1957, %v1984
      %v2002 = vmul.f32 %v1958, %v1988
      %v2003 = vmul.f32 %v1959, %v1984
      %v2004 = vmul.f32 %v1960, %v1988
      %v2005 = vmul.f32 %v1961, %v1984
      %v2006 = vmul.f32 %v1962, %v1988
      %v2007 = vmul.f32 %v1963, %v1984
      %v2008 = vmul.f32 %v1964, %v1988
      %v2009 = vmul.f32 %v1965, %v1984
      %v2010 = vmul.f32 %v1966, %v1988
      %v2011 = vmul.f32 %v1967, %v1984
      %v2012 = vmul.f32 %v1968, %v1988
      %v2013 = vmul.f32 %v1969, %v1984
      %v2014 = vmul.f32 %v1970, %v1988
      %v2015 = vmul.f32 %v1971, %v1984
      %v2016 = vmul.f32 %v1972, %v1988
      %v2017 = vmul.f32 %v1973, %v1984
      %v2018 = vmul.f32 %v1974, %v1988
      %v2019 = vmul.f32 %v1975, %v1984
      %v2020 = vmul.f32 %v1976, %v1988
      %v2021 = vmul.f32 %v1977, %v1984
      %v2022 = vmul.f32 %v1978, %v1988
      %v2023 = vadd.f32 %v1578, %v1991
      %v2024 = vadd.f32 %v1579, %v1992
      %v2025 = vadd.f32 %v1580, %v1993
      %v2026 = vadd.f32 %v1581, %v1994
      %v2027 = vadd.f32 %v1582, %v1995
      %v2028 = vadd.f32 %v1583, %v1996
      %v2029 = vadd.f32 %v1584, %v1997
      %v2030 = vadd.f32 %v1585, %v1998
      %v2031 = vadd.f32 %v1586, %v1999
      %v2032 = vadd.f32 %v1587, %v2000
      %v2033 = vadd.f32 %v1588, %v2001
      %v2034 = vadd.f32 %v1589, %v2002
      %v2035 = vadd.f32 %v1590, %v2003
      %v2036 = vadd.f32 %v1591, %v2004
      %v2037 = vadd.f32 %v1592, %v2005
      %v2038 = vadd.f32 %v1593, %v2006
      %v2039 = vadd.f32 %v1594, %v2007
      %v2040 = vadd.f32 %v1595, %v2008
      %v2041 = vadd.f32 %v1596, %v2009
      %v2042 = vadd.f32 %v1597, %v2010
      %v2043 = vadd.f32 %v1598, %v2011
      %v2044 = vadd.f32 %v1599, %v2012
      %v2045 = vadd.f32 %v1600, %v2013
      %v2046 = vadd.f32 %v1601, %v2014
      %v2047 = vadd.f32 %v1602, %v2015
      %v2048 = vadd.f32 %v1603, %v2016
      %v2049 = vadd.f32 %v1604, %v2017
      %v2050 = vadd.f32 %v1605, %v2018
      %v2051 = vadd.f32 %v1606, %v2019
      %v2052 = vadd.f32 %v1607, %v2020
      %v2053 = vadd.f32 %v1608, %v2021
      %v2054 = vadd.f32 %v1609, %v2022
      %s2055 = sld [smem:[#allocation2]]
      %2056 = vadd.xlane.f32.xlu0 %v2023
      %v2057 = vpop.xlane.xlu0 %2056
      %2058 = vadd.xlane.f32.xlu0 %v2025
      %v2059 = vpop.xlane.xlu0 %2058
      %2060 = vadd.xlane.f32.xlu0 %v2027
      %v2061 = vpop.xlane.xlu0 %2060
      %2062 = vadd.xlane.f32.xlu0 %v2029
      %v2063 = vpop.xlane.xlu0 %2062
      %2064 = vadd.xlane.f32.xlu0 %v2031
      %v2065 = vpop.xlane.xlu0 %2064
      %2066 = vadd.xlane.f32.xlu0 %v2033
      %v2067 = vpop.xlane.xlu0 %2066
      %2068 = vadd.xlane.f32.xlu0 %v2035
      %v2069 = vpop.xlane.xlu0 %2068
      %2070 = vadd.xlane.f32.xlu0 %v2037
      %v2071 = vpop.xlane.xlu0 %2070
      %2072 = vadd.xlane.f32.xlu0 %v2039
      %v2073 = vpop.xlane.xlu0 %2072
      %2074 = vadd.xlane.f32.xlu0 %v2041
      %v2075 = vpop.xlane.xlu0 %2074
      %2076 = vadd.xlane.f32.xlu0 %v2043
      %v2077 = vpop.xlane.xlu0 %2076
      %2078 = vadd.xlane.f32.xlu0 %v2045
      %v2079 = vpop.xlane.xlu0 %2078
      %2080 = vadd.xlane.f32.xlu0 %v2047
      %v2081 = vpop.xlane.xlu0 %2080
      %2082 = vadd.xlane.f32.xlu0 %v2049
      %v2083 = vpop.xlane.xlu0 %2082
      %2084 = vadd.xlane.f32.xlu0 %v2051
      %v2085 = vpop.xlane.xlu0 %2084
      %2086 = vadd.xlane.f32.xlu0 %v2053
      %v2087 = vpop.xlane.xlu0 %2086
      %v2088 = vstv %s2055
      %v2089 = vadd.f32 %v2057, %v2088
      %v2090 = vadd.f32 %v2059, %v2088
      %v2091 = vadd.f32 %v2061, %v2088
      %v2092 = vadd.f32 %v2063, %v2088
      %v2093 = vadd.f32 %v2065, %v2088
      %v2094 = vadd.f32 %v2067, %v2088
      %v2095 = vadd.f32 %v2069, %v2088
      %v2096 = vadd.f32 %v2071, %v2088
      %v2097 = vadd.f32 %v2073, %v2088
      %v2098 = vadd.f32 %v2075, %v2088
      %v2099 = vadd.f32 %v2077, %v2088
      %v2100 = vadd.f32 %v2079, %v2088
      %v2101 = vadd.f32 %v2081, %v2088
      %v2102 = vadd.f32 %v2083, %v2088
      %v2103 = vadd.f32 %v2085, %v2088
      %v2104 = vadd.f32 %v2087, %v2088
      %2105 = vadd.xlane.f32.xlu0 %v2024
      %v2106 = vpop.xlane.xlu0 %2105
      %2107 = vadd.xlane.f32.xlu0 %v2026
      %v2108 = vpop.xlane.xlu0 %2107
      %2109 = vadd.xlane.f32.xlu0 %v2028
      %v2110 = vpop.xlane.xlu0 %2109
      %2111 = vadd.xlane.f32.xlu0 %v2030
      %v2112 = vpop.xlane.xlu0 %2111
      %2113 = vadd.xlane.f32.xlu0 %v2032
      %v2114 = vpop.xlane.xlu0 %2113
      %2115 = vadd.xlane.f32.xlu0 %v2034
      %v2116 = vpop.xlane.xlu0 %2115
      %2117 = vadd.xlane.f32.xlu0 %v2036
      %v2118 = vpop.xlane.xlu0 %2117
      %2119 = vadd.xlane.f32.xlu0 %v2038
      %v2120 = vpop.xlane.xlu0 %2119
      %2121 = vadd.xlane.f32.xlu0 %v2040
      %v2122 = vpop.xlane.xlu0 %2121
      %2123 = vadd.xlane.f32.xlu0 %v2042
      %v2124 = vpop.xlane.xlu0 %2123
      %2125 = vadd.xlane.f32.xlu0 %v2044
      %v2126 = vpop.xlane.xlu0 %2125
      %2127 = vadd.xlane.f32.xlu0 %v2046
      %v2128 = vpop.xlane.xlu0 %2127
      %2129 = vadd.xlane.f32.xlu0 %v2048
      %v2130 = vpop.xlane.xlu0 %2129
      %2131 = vadd.xlane.f32.xlu0 %v2050
      %v2132 = vpop.xlane.xlu0 %2131
      %2133 = vadd.xlane.f32.xlu0 %v2052
      %v2134 = vpop.xlane.xlu0 %2133
      %2135 = vadd.xlane.f32.xlu0 %v2054
      %v2136 = vpop.xlane.xlu0 %2135
      %v2137 = vadd.f32 %v2106, %v2088
      %v2138 = vadd.f32 %v2108, %v2088
      %v2139 = vadd.f32 %v2110, %v2088
      %v2140 = vadd.f32 %v2112, %v2088
      %v2141 = vadd.f32 %v2114, %v2088
      %v2142 = vadd.f32 %v2116, %v2088
      %v2143 = vadd.f32 %v2118, %v2088
      %v2144 = vadd.f32 %v2120, %v2088
      %v2145 = vadd.f32 %v2122, %v2088
      %v2146 = vadd.f32 %v2124, %v2088
      %v2147 = vadd.f32 %v2126, %v2088
      %v2148 = vadd.f32 %v2128, %v2088
      %v2149 = vadd.f32 %v2130, %v2088
      %v2150 = vadd.f32 %v2132, %v2088
      %v2151 = vadd.f32 %v2134, %v2088
      %v2152 = vadd.f32 %v2136, %v2088
      %v2169 = vlaneseq
      %v2170 = vand.u32 %v2169, 127
      %v2171 = vlaneseq
      %v2172 = vshrl.u32 %v2171, 7
      %v2173 = vsub.s32 %v2170, %v2172
      %v2174 = vrot.slane %v2089, %v2173
      %v2175 = vadd.s32 %v2170, 4294967288
      %v2176 = vlaneseq
      %v2177 = vshrl.u32 %v2176, 7
      %v2178 = vsub.s32 %v2175, %v2177
      %v2179 = vrot.slane %v2090, %v2178
      %vm2180 = vcmask 130112
      %v2181 = vsel %vm2180, %v2179, %v2174
      %v2182 = vadd.s32 %v2170, 4294967280
      %v2183 = vlaneseq
      %v2184 = vshrl.u32 %v2183, 7
      %v2185 = vsub.s32 %v2182, %v2184
      %v2186 = vrot.slane %v2091, %v2185
      %vm2187 = vcmask 195712
      %v2188 = vsel %vm2187, %v2186, %v2181
      %v2189 = vadd.s32 %v2170, 4294967272
      %v2190 = vlaneseq
      %v2191 = vshrl.u32 %v2190, 7
      %v2192 = vsub.s32 %v2189, %v2191
      %v2193 = vrot.slane %v2092, %v2192
      %vm2194 = vcmask 261312
      %v2195 = vsel %vm2194, %v2193, %v2188
      %v2196 = vadd.s32 %v2170, 4294967264
      %v2197 = vlaneseq
      %v2198 = vshrl.u32 %v2197, 7
      %v2199 = vsub.s32 %v2196, %v2198
      %v2200 = vrot.slane %v2093, %v2199
      %vm2201 = vcmask 326912
      %v2202 = vsel %vm2201, %v2200, %v2195
      %v2203 = vadd.s32 %v2170, 4294967256
      %v2204 = vlaneseq
      %v2205 = vshrl.u32 %v2204, 7
      %v2206 = vsub.s32 %v2203, %v2205
      %v2207 = vrot.slane %v2094, %v2206
      %vm2208 = vcmask 392512
      %v2209 = vsel %vm2208, %v2207, %v2202
      %v2210 = vadd.s32 %v2170, 4294967248
      %v2211 = vlaneseq
      %v2212 = vshrl.u32 %v2211, 7
      %v2213 = vsub.s32 %v2210, %v2212
      %v2214 = vrot.slane %v2095, %v2213
      %vm2215 = vcmask 458112
      %v2216 = vsel %vm2215, %v2214, %v2209
      %v2217 = vadd.s32 %v2170, 4294967240
      %v2218 = vlaneseq
      %v2219 = vshrl.u32 %v2218, 7
      %v2220 = vsub.s32 %v2217, %v2219
      %v2221 = vrot.slane %v2096, %v2220
      %vm2222 = vcmask 523712
      %v2223 = vsel %vm2222, %v2221, %v2216
      %v2224 = vadd.s32 %v2170, 4294967232
      %v2225 = vlaneseq
      %v2226 = vshrl.u32 %v2225, 7
      %v2227 = vsub.s32 %v2224, %v2226
      %v2228 = vrot.slane %v2097, %v2227
      %vm2229 = vcmask 589312
      %v2230 = vsel %vm2229, %v2228, %v2223
      %v2231 = vadd.s32 %v2170, 4294967224
      %v2232 = vlaneseq
      %v2233 = vshrl.u32 %v2232, 7
      %v2234 = vsub.s32 %v2231, %v2233
      %v2235 = vrot.slane %v2098, %v2234
      %vm2236 = vcmask 654912
      %v2237 = vsel %vm2236, %v2235, %v2230
      %v2238 = vadd.s32 %v2170, 4294967216
      %v2239 = vlaneseq
      %v2240 = vshrl.u32 %v2239, 7
      %v2241 = vsub.s32 %v2238, %v2240
      %v2242 = vrot.slane %v2099, %v2241
      %vm2243 = vcmask 720512
      %v2244 = vsel %vm2243, %v2242, %v2237
      %v2245 = vadd.s32 %v2170, 4294967208
      %v2246 = vlaneseq
      %v2247 = vshrl.u32 %v2246, 7
      %v2248 = vsub.s32 %v2245, %v2247
      %v2249 = vrot.slane %v2100, %v2248
      %vm2250 = vcmask 786112
      %v2251 = vsel %vm2250, %v2249, %v2244
      %v2252 = vadd.s32 %v2170, 4294967200
      %v2253 = vlaneseq
      %v2254 = vshrl.u32 %v2253, 7
      %v2255 = vsub.s32 %v2252, %v2254
      %v2256 = vrot.slane %v2101, %v2255
      %vm2257 = vcmask 851712
      %v2258 = vsel %vm2257, %v2256, %v2251
      %v2259 = vadd.s32 %v2170, 4294967192
      %v2260 = vlaneseq
      %v2261 = vshrl.u32 %v2260, 7
      %v2262 = vsub.s32 %v2259, %v2261
      %v2263 = vrot.slane %v2102, %v2262
      %vm2264 = vcmask 917312
      %v2265 = vsel %vm2264, %v2263, %v2258
      %v2266 = vadd.s32 %v2170, 4294967184
      %v2267 = vlaneseq
      %v2268 = vshrl.u32 %v2267, 7
      %v2269 = vsub.s32 %v2266, %v2268
      %v2270 = vrot.slane %v2103, %v2269
      %vm2271 = vcmask 982912
      %v2272 = vsel %vm2271, %v2270, %v2265
      %v2273 = vadd.s32 %v2170, 4294967176
      %v2274 = vlaneseq
      %v2275 = vshrl.u32 %v2274, 7
      %v2276 = vsub.s32 %v2273, %v2275
      %v2277 = vrot.slane %v2104, %v2276
      %vm2278 = vcmask 1048512
      %v2279 = vsel %vm2278, %v2277, %v2272
      %v2297 = vlaneseq
      %v2298 = vshrl.u32 %v2297, 7
      %v2299 = vsub.s32 %v2170, %v2298
      %v2300 = vrot.slane %v2137, %v2299
      %v2301 = vlaneseq
      %v2302 = vshrl.u32 %v2301, 7
      %v2303 = vsub.s32 %v2175, %v2302
      %v2304 = vrot.slane %v2138, %v2303
      %v2305 = vsel %vm2180, %v2304, %v2300
      %v2306 = vlaneseq
      %v2307 = vshrl.u32 %v2306, 7
      %v2308 = vsub.s32 %v2182, %v2307
      %v2309 = vrot.slane %v2139, %v2308
      %v2310 = vsel %vm2187, %v2309, %v2305
      %v2311 = vlaneseq
      %v2312 = vshrl.u32 %v2311, 7
      %v2313 = vsub.s32 %v2189, %v2312
      %v2314 = vrot.slane %v2140, %v2313
      %v2315 = vsel %vm2194, %v2314, %v2310
      %v2316 = vlaneseq
      %v2317 = vshrl.u32 %v2316, 7
      %v2318 = vsub.s32 %v2196, %v2317
      %v2319 = vrot.slane %v2141, %v2318
      %v2320 = vsel %vm2201, %v2319, %v2315
      %v2321 = vlaneseq
      %v2322 = vshrl.u32 %v2321, 7
      %v2323 = vsub.s32 %v2203, %v2322
      %v2324 = vrot.slane %v2142, %v2323
      %v2325 = vsel %vm2208, %v2324, %v2320
      %v2326 = vlaneseq
      %v2327 = vshrl.u32 %v2326, 7
      %v2328 = vsub.s32 %v2210, %v2327
      %v2329 = vrot.slane %v2143, %v2328
      %v2330 = vsel %vm2215, %v2329, %v2325
      %v2331 = vlaneseq
      %v2332 = vshrl.u32 %v2331, 7
      %v2333 = vsub.s32 %v2217, %v2332
      %v2334 = vrot.slane %v2144, %v2333
      %v2335 = vsel %vm2222, %v2334, %v2330
      %v2336 = vlaneseq
      %v2337 = vshrl.u32 %v2336, 7
      %v2338 = vsub.s32 %v2224, %v2337
      %v2339 = vrot.slane %v2145, %v2338
      %v2340 = vsel %vm2229, %v2339, %v2335
      %v2341 = vlaneseq
      %v2342 = vshrl.u32 %v2341, 7
      %v2343 = vsub.s32 %v2231, %v2342
      %v2344 = vrot.slane %v2146, %v2343
      %v2345 = vsel %vm2236, %v2344, %v2340
      %v2346 = vlaneseq
      %v2347 = vshrl.u32 %v2346, 7
      %v2348 = vsub.s32 %v2238, %v2347
      %v2349 = vrot.slane %v2147, %v2348
      %v2350 = vsel %vm2243, %v2349, %v2345
      %v2351 = vlaneseq
      %v2352 = vshrl.u32 %v2351, 7
      %v2353 = vsub.s32 %v2245, %v2352
      %v2354 = vrot.slane %v2148, %v2353
      %v2355 = vsel %vm2250, %v2354, %v2350
      %v2356 = vlaneseq
      %v2357 = vshrl.u32 %v2356, 7
      %v2358 = vsub.s32 %v2252, %v2357
      %v2359 = vrot.slane %v2149, %v2358
      %v2360 = vsel %vm2257, %v2359, %v2355
      %v2361 = vlaneseq
      %v2362 = vshrl.u32 %v2361, 7
      %v2363 = vsub.s32 %v2259, %v2362
      %v2364 = vrot.slane %v2150, %v2363
      %v2365 = vsel %vm2264, %v2364, %v2360
      %v2366 = vlaneseq
      %v2367 = vshrl.u32 %v2366, 7
      %v2368 = vsub.s32 %v2266, %v2367
      %v2369 = vrot.slane %v2151, %v2368
      %v2370 = vsel %vm2271, %v2369, %v2365
      %v2371 = vlaneseq
      %v2372 = vshrl.u32 %v2371, 7
      %v2373 = vsub.s32 %v2273, %v2372
      %v2374 = vrot.slane %v2152, %v2373
      %v2375 = vsel %vm2278, %v2374, %v2370
      %vm2377 = vcmask 1040384
      %v2378 = vsel %vm2377, %v2279, %v2375
      %2379 = vst [vmem:[%s390] sm:$0x3] %v2378
      %p2380 = scmp.lt.s32.totalorder %s23, 1
      %s2381 = scalar_select %p2380, %s23, 1
      %s2382 = smul.addr %s2381, 2
      %s2383 = scalar_lea.vmem %s11, %s2382
      // Predicated region
      $region65: #{ncf_forward.1} parent=63 // pred_check
        %p2384 = pneg %p277
      $region66: #{ncf_forward.1} parent=63 // pred_check_branch
        %2386 = sbr.rel (%p2384) target = $region68
      $region67: #{ncf_forward.1} parent=63 // pred_region
        _
      $region68: #{ncf_forward.1} parent=63 // pred_fallthru
        _
    $region64: #{ncf_forward.1} parent=5 // pred_fallthru
      _
    %p2387 = scmp.le.s32.totalorder 2, %s18
    // Predicated region
    $region69: #{ncf_forward.1} parent=5 // pred_check
      %p2388 = pneg %p2387
    $region70: #{ncf_forward.1} parent=5 // pred_check_branch
      %2390 = sbr.rel (%p2388) target = $region72
    $region71: #{ncf_forward.1} parent=5 // pred_region
      %s2391 = ssub.s32 %s18, 2
      // Predicated region
      $region73: #{ncf_forward.1} parent=71 // pred_check
        %p2392 = pneg %p283
      $region74: #{ncf_forward.1} parent=71 // pred_check_branch
        %2394 = sbr.rel (%p2392) target = $region76
      $region75: #{ncf_forward.1} parent=71 // pred_region
        %p2395 = scmp.lt.s32.totalorder %s24, 1
        %s2396 = scalar_select %p2395, %s24, 1
        %s2397 = smul.addr %s2396, 2
        %s2398 = scalar_lea.vmem %s11, %s2397
      $region76: #{ncf_forward.1} parent=71 // pred_fallthru
        _
    $region72: #{ncf_forward.1} parent=5 // pred_fallthru
      _
  $region6: #{ncf_forward.1} parent=0 // loop_footer
    %s22 = sadd.s32 1, %s18
  $region7: #{ncf_forward.1} parent=0 // loop_footer_branch
    %17 = sbr.rel target = $region3
  $region8: #{ncf_forward.1} parent=0 // loop_exit
    _

</llo_original>
